<compile_context>
chip_gen: v5e
topology: v5e:2x2
jax: 0.10.0
libtpu: 0.0.40
codegen_flags: <defaults>
</compile_context>

<pallas_src>
import functools

import jax
import jax.numpy as jnp
from jax.experimental import pallas as pl
from jax.experimental.pallas import tpu as pltpu

EPS = 1e-5
LANE = 128
SUBLANE = 8


def _round_up(x, m):
    return (x + m - 1) // m * m


def _pick_tile_h(ho, target=8):
    for cand in range(min(target, ho), 0, -1):
        if ho % cand == 0:
            return cand
    return ho


def _prelu(x, alpha):
    return jnp.where(x >= 0, x, alpha * x)


def bottleneck_kernel(x_hbm, w1_ref, b1_ref, a1_ref, wdw_ref, b2_ref, a2_ref,
                      w3_ref, b3_ref, out_ref, xbuf, dma_sem, *dw_scratch,
                      stride, tile_h, h_img, w_img):
    tin_h, wp, cin = xbuf.shape
    chid = w1_ref.shape[1]
    wo_pad = out_ref.shape[2]
    cout = out_ref.shape[3]

    n = pl.program_id(0)
    t = pl.program_id(1)
    row0 = pl.multiple_of(t * (tile_h * stride), tile_h * stride)

    # Fetch this tile's input rows (tile_h*stride rows + 2-row halo) from HBM.
    cp = pltpu.make_async_copy(x_hbm.at[n, pl.ds(row0, tin_h)], xbuf, dma_sem)
    cp.start()
    cp.wait()

    # ---- 1x1 expand conv (BN scale folded into w1) + bias + PReLU ----
    # wp % 8 == 0, so this reshape is layout-preserving.
    h1 = jnp.dot(xbuf[...].reshape(tin_h * wp, cin), w1_ref[...],
                 preferred_element_type=jnp.float32)                 # (tin_h*wp, chid) f32
    h1 = _prelu(h1 + b1_ref[...], a1_ref[...]).reshape(tin_h, wp, chid)

    # Zero everything outside the valid interior (spatial halo + width padding)
    # with a single 2-D mask broadcast over channels.
    r_idx = jax.lax.broadcasted_iota(jnp.int32, (tin_h, wp), 0) + row0
    c_idx = jax.lax.broadcasted_iota(jnp.int32, (tin_h, wp), 1)
    interior = ((r_idx >= 1) & (r_idx <= h_img) &
                (c_idx >= 1) & (c_idx <= w_img)).astype(jnp.float32)
    padded = h1 * interior[:, :, None]                               # (tin_h, wp, chid)

    # ---- 3x3 depthwise conv (BN scale folded into wdw) ----
    acc = jnp.zeros((tile_h, wo_pad, chid), jnp.float32)
    if stride == 1:
        for kw in range(3):
            p_kw = jnp.zeros((tile_h, wp, chid), jnp.float32)
            for kh in range(3):
                w_tap = wdw_ref[kh * 3 + kw, :].reshape(1, 1, chid)
                p_kw = p_kw + w_tap * padded[kh:kh + tile_h]
            acc = acc + p_kw[:, kw:kw + wo_pad, :]
    else:
        (dw_row,) = dw_scratch
        # Row decimation is free: split the (non-tiled) row axis and keep phase 0,
        # so the 9 multiplies run at the decimated row count.
        rows = [padded[kh:kh + stride * tile_h]
                .reshape(tile_h, stride, wp, chid)[:, 0]
                for kh in range(3)]
        for kw in range(3):
            p_kw = jnp.zeros((tile_h, wp, chid), jnp.float32)
            for kh in range(3):
                w_tap = wdw_ref[kh * 3 + kw, :].reshape(1, 1, chid)
                p_kw = p_kw + w_tap * rows[kh]
            dw_row[...] = p_kw
            # Decimate W once per kw column via a strided VMEM read.
            acc = acc + dw_row[:, pl.ds(kw, wo_pad, stride=stride), :]

    h2 = _prelu(acc.reshape(tile_h * wo_pad, chid) + b2_ref[...], a2_ref[...])

    # ---- 1x1 project conv (BN scale folded into w3) + bias ----
    h3 = jnp.dot(h2.astype(w3_ref.dtype), w3_ref[...],
                 preferred_element_type=jnp.float32)
    h3 = h3 + b3_ref[...]
    out_ref[0] = h3.reshape(tile_h, wo_pad, cout).astype(out_ref.dtype)


def _fold_bn(gamma, beta, mean, var):
    scale = (gamma / jnp.sqrt(var + EPS)).astype(jnp.float32)
    bias = (beta - mean * scale).astype(jnp.float32)
    return scale, bias


def bottleneck_forward(x_nchw, params, *, stride):
    """Pallas implementation of BottleNeck.forward (x is NCHW, like PyTorch)."""
    N, Cin, H, W = x_nchw.shape
    Chid = params["w1"].shape[0]
    Cout = params["w3"].shape[0]
    connect = (stride == 1) and (Cin == Cout)
    Ho = (H - 1) // stride + 1
    Wo = (W - 1) // stride + 1

    # ---- glue (plain JAX, runs at trace time) ----
    s1, b1 = _fold_bn(*params["bn1"])
    s2, b2 = _fold_bn(*params["bn2"])
    s3, b3 = _fold_bn(*params["bn3"])

    # Fold BN scales into the conv weights.
    w1 = params["w1"][:, :, 0, 0].T.astype(jnp.float32) * s1[None, :]            # (Cin, Chid)
    wdw = (jnp.transpose(params["wdw"][:, 0, :, :], (1, 2, 0)).astype(jnp.float32)
           * s2[None, None, :]).reshape(9, Chid)                                  # (9, Chid)
    w3 = params["w3"][:, :, 0, 0].T.astype(jnp.float32) * s3[None, :]             # (Chid, Cout)
    a1 = params["a1"].astype(jnp.float32)
    a2 = params["a2"].astype(jnp.float32)

    # Lane-align channel dims; sublane-align spatial W (and the depthwise tap rows).
    Cin_p = _round_up(Cin, LANE)
    Chid_p = _round_up(Chid, LANE)
    Cout_p = _round_up(Cout, LANE)
    Wo_pad = _round_up(Wo, SUBLANE)
    Wp = _round_up(stride * Wo_pad + 2, SUBLANE)       # >= W + 2, covers all taps
    tile_h = _pick_tile_h(Ho)
    n_t = Ho // tile_h
    tin_h = tile_h * stride + 2
    Hp = stride * Ho + 2                               # last row tile ends exactly at Hp

    def pad2(a, r, c, dtype):
        return jnp.zeros((r, c), dtype).at[:a.shape[0], :a.shape[1]].set(a.astype(dtype))

    def padv(a, c):
        return jnp.zeros((1, c), jnp.float32).at[0, :a.shape[0]].set(a)

    w1p = pad2(w1, Cin_p, Chid_p, jnp.bfloat16)
    w3p = pad2(w3, Chid_p, Cout_p, jnp.bfloat16)
    wdwp = pad2(wdw, 16, Chid_p, jnp.float32)          # 9 taps row-indexed as kh*3+kw
    b1p, a1p = padv(b1, Chid_p), padv(a1, Chid_p)
    b2p, a2p = padv(b2, Chid_p), padv(a2, Chid_p)
    b3p = padv(b3, Cout_p)

    # NHWC bf16, spatially pre-padded (zero halo + alignment), lane-padded channels.
    x_nhwc = jnp.transpose(x_nchw, (0, 2, 3, 1)).astype(jnp.bfloat16)
    xp = jnp.zeros((N, Hp, Wp, Cin_p), jnp.bfloat16)
    xp = xp.at[:, 1:H + 1, 1:W + 1, :Cin].set(x_nhwc)

    kernel = functools.partial(bottleneck_kernel, stride=stride, tile_h=tile_h,
                               h_img=H, w_img=W)

    scratch = [pltpu.VMEM((tin_h, Wp, Cin_p), jnp.bfloat16),   # input row-tile buffer
               pltpu.SemaphoreType.DMA(())]
    if stride > 1:
        scratch.append(pltpu.VMEM((tile_h, Wp, Chid_p), jnp.float32))  # W-decimation staging

    wgt = lambda n, t: (0, 0)

    out_nhwc = pl.pallas_call(
        kernel,
        out_shape=jax.ShapeDtypeStruct((N, Ho, Wo_pad, Cout_p), jnp.bfloat16),
        grid_spec=pltpu.PrefetchScalarGridSpec(
            num_scalar_prefetch=0,
            grid=(N, n_t),
            in_specs=[
                pl.BlockSpec(memory_space=pl.ANY),       # x stays in HBM; rows DMA'd per tile
                pl.BlockSpec((Cin_p, Chid_p), wgt),
                pl.BlockSpec((1, Chid_p), wgt),
                pl.BlockSpec((1, Chid_p), wgt),
                pl.BlockSpec((16, Chid_p), wgt),
                pl.BlockSpec((1, Chid_p), wgt),
                pl.BlockSpec((1, Chid_p), wgt),
                pl.BlockSpec((Chid_p, Cout_p), wgt),
                pl.BlockSpec((1, Cout_p), wgt),
            ],
            out_specs=pl.BlockSpec((1, tile_h, Wo_pad, Cout_p),
                                   lambda n, t: (n, t, 0, 0)),
            scratch_shapes=scratch,
        ),
        compiler_params=pltpu.CompilerParams(
            dimension_semantics=("parallel", "parallel"),
            vmem_limit_bytes=32 * 1024 * 1024),
    )(xp, w1p, b1p, a1p, wdwp, b2p, a2p, w3p, b3p)

    out = out_nhwc[:, :, :Wo, :Cout].astype(jnp.float32)       # drop alignment padding
    out = jnp.transpose(out, (0, 3, 1, 2))                     # back to NCHW
    if connect:
        out = out + x_nchw                                     # residual, fused by XLA
    return out


# ---------------- pure-JAX reference (NCHW, matches PyTorch semantics) -------
def bottleneck_reference(x, p, *, stride):
    Cin = x.shape[1]
    Cout = p["w3"].shape[0]
    connect = (stride == 1) and (Cin == Cout)

    def bn(y, g, b, m, v):
        g, b, m, v = (t[None, :, None, None] for t in (g, b, m, v))
        return (y - m) / jnp.sqrt(v + EPS) * g + b

    def prelu(y, a):
        return jnp.where(y >= 0, y, a[None, :, None, None] * y)

    y = jax.lax.conv_general_dilated(x, p["w1"], (1, 1), "VALID")
    y = prelu(bn(y, *p["bn1"]), p["a1"])
    y = jax.lax.conv_general_dilated(y, p["wdw"], (stride, stride),
                                     ((1, 1), (1, 1)),
                                     feature_group_count=p["wdw"].shape[0])
    y = prelu(bn(y, *p["bn2"]), p["a2"])
    y = jax.lax.conv_general_dilated(y, p["w3"], (1, 1), "VALID")
    y = bn(y, *p["bn3"])
    return x + y if connect else y


def make_params(key, inp, oup, expansion):
    Chid = inp * expansion
    ks = jax.random.split(key, 16)

    def bn_params(k, c):
        k1, k2, k3, k4 = jax.random.split(k, 4)
        gamma = 0.5 + jax.random.uniform(k1, (c,))
        beta = 0.1 * jax.random.normal(k2, (c,))
        mean = 0.1 * jax.random.normal(k3, (c,))
        var = 0.5 + jax.random.uniform(k4, (c,))
        return (gamma, beta, mean, var)

    return {
        "w1": 0.2 * jax.random.normal(ks[0], (Chid, inp, 1, 1)),
        "bn1": bn_params(ks[1], Chid),
        "a1": 0.25 + 0.05 * jax.random.normal(ks[2], (Chid,)),
        "wdw": 0.2 * jax.random.normal(ks[3], (Chid, 1, 3, 3)),
        "bn2": bn_params(ks[4], Chid),
        "a2": 0.25 + 0.05 * jax.random.normal(ks[5], (Chid,)),
        "w3": 0.2 * jax.random.normal(ks[6], (oup, Chid, 1, 1)),
        "bn3": bn_params(ks[7], oup),
    }


def _run_case(key, *, inp, oup, stride, expansion, N=2, H=16, W=16):
    kx, kp = jax.random.split(key)
    x = jax.random.normal(kx, (N, inp, H, W), dtype=jnp.float32)
    params = make_params(kp, inp, oup, expansion)
    out = jax.block_until_ready(bottleneck_forward(x, params, stride=stride))
    ref = jax.block_until_ready(bottleneck_reference(x, params, stride=stride))
    assert out.shape == ref.shape, (out.shape, ref.shape)
    err = float(jnp.max(jnp.abs(out - ref)))
    # bf16 activations/weights => looser tolerance than the all-f32 version.
    assert bool(jnp.allclose(out, ref, atol=5e-2, rtol=5e-2)), f"stride={stride} max err={err}"
    return err


if __name__ == "__main__":
    key = jax.random.PRNGKey(0)
    k1, k2 = jax.random.split(key)

    # Case 1: BottleNeck(inp=4, oup=4, stride=1, expansion=2) -> residual path,
    #         two row tiles per image (exercises the halo mask on both edges).
    _run_case(k1, inp=4, oup=4, stride=1, expansion=2)

    # Case 2: BottleNeck(inp=4, oup=8, stride=2, expansion=2) -> downsampling path
    #         (decimate-before-multiply depthwise branch).
    _run_case(k2, inp=4, oup=8, stride=2, expansion=2)

    print("KERNEL_OK")
</pallas_src>

<mosaic_0001>
module attributes {stable_mosaic.version = 11 : i64} {
  func.func @bottleneck_kernel(%arg0: i32, %arg1: i32, %arg2: memref<2x18x24x128xbf16, #tpu.memory_space<any>>, %arg3: memref<128x128xbf16, #tpu.memory_space<vmem>>, %arg4: memref<1x128xf32, #tpu.memory_space<vmem>>, %arg5: memref<1x128xf32, #tpu.memory_space<vmem>>, %arg6: memref<16x128xf32, #tpu.memory_space<vmem>>, %arg7: memref<1x128xf32, #tpu.memory_space<vmem>>, %arg8: memref<1x128xf32, #tpu.memory_space<vmem>>, %arg9: memref<128x128xbf16, #tpu.memory_space<vmem>>, %arg10: memref<1x128xf32, #tpu.memory_space<vmem>>, %arg11: memref<1x8x16x128xbf16, #tpu.memory_space<vmem>>, %arg12: memref<10x24x128xbf16, #tpu.memory_space<vmem>>, %arg13: memref<!tpu.dma_semaphore, #tpu.memory_space<semaphore_mem>>) attributes {dimension_semantics = [#tpu.dimension_semantics<parallel>, #tpu.dimension_semantics<parallel>], iteration_bounds = array<i64: 2, 2>, scalar_prefetch = 0 : i64, scratch_operands = 2 : i64, tpu.core_type = #tpu.core_type<tc>, window_params = [{}, {pipeline_mode = #tpu.pipeline_mode<synchronous>, transform_indices = @transform_1, window_bounds = array<i64: 128, 128>}, {pipeline_mode = #tpu.pipeline_mode<synchronous>, transform_indices = @transform_2, window_bounds = array<i64: 1, 128>}, {pipeline_mode = #tpu.pipeline_mode<synchronous>, transform_indices = @transform_3, window_bounds = array<i64: 1, 128>}, {pipeline_mode = #tpu.pipeline_mode<synchronous>, transform_indices = @transform_4, window_bounds = array<i64: 16, 128>}, {pipeline_mode = #tpu.pipeline_mode<synchronous>, transform_indices = @transform_5, window_bounds = array<i64: 1, 128>}, {pipeline_mode = #tpu.pipeline_mode<synchronous>, transform_indices = @transform_6, window_bounds = array<i64: 1, 128>}, {pipeline_mode = #tpu.pipeline_mode<synchronous>, transform_indices = @transform_7, window_bounds = array<i64: 128, 128>}, {pipeline_mode = #tpu.pipeline_mode<synchronous>, transform_indices = @transform_8, window_bounds = array<i64: 1, 128>}, {transform_indices = @transform_9, window_bounds = array<i64: 1, 8, 16, 128>}]} {
    %c8_i32 = arith.constant 8 : i32
    %0 = arith.muli %arg1, %c8_i32 : i32
    %1 = tpu.assume_multiple %0, 8 : i32
    %c0_i32 = arith.constant 0 : i32
    %c0_i32_0 = arith.constant 0 : i32
    %2 = tpu.memref_slice %arg2[%arg0, %1, %c0_i32, %c0_i32_0] : memref<2x18x24x128xbf16, #tpu.memory_space<any>> -> memref<1x10x24x128xbf16, #tpu.memory_space<any>>
    %3 = tpu.memref_squeeze %2 : memref<1x10x24x128xbf16, #tpu.memory_space<any>> -> memref<10x24x128xbf16, #tpu.memory_space<any>>
    tpu.enqueue_dma source(%3 : memref<10x24x128xbf16, #tpu.memory_space<any>>) target(%arg12 : memref<10x24x128xbf16, #tpu.memory_space<vmem>>) target_semaphore(%arg13 : memref<!tpu.dma_semaphore, #tpu.memory_space<semaphore_mem>>)
    %c0_i32_1 = arith.constant 0 : i32
    %c0_i32_2 = arith.constant 0 : i32
    %4 = tpu.memref_slice %arg2[%arg0, %1, %c0_i32_1, %c0_i32_2] : memref<2x18x24x128xbf16, #tpu.memory_space<any>> -> memref<1x10x24x128xbf16, #tpu.memory_space<any>>
    %5 = tpu.memref_squeeze %4 : memref<1x10x24x128xbf16, #tpu.memory_space<any>> -> memref<10x24x128xbf16, #tpu.memory_space<any>>
    tpu.wait_dma2 semaphore(%arg13 : memref<!tpu.dma_semaphore, #tpu.memory_space<semaphore_mem>>) src(%5 : memref<10x24x128xbf16, #tpu.memory_space<any>>) dst(%arg12 : memref<10x24x128xbf16, #tpu.memory_space<vmem>>)
    %c0 = arith.constant 0 : index
    %c0_3 = arith.constant 0 : index
    %c0_4 = arith.constant 0 : index
    %6 = vector.load %arg12[%c0, %c0_3, %c0_4] : memref<10x24x128xbf16, #tpu.memory_space<vmem>>, vector<10x24x128xbf16>
    %7 = vector.shape_cast %6 : vector<10x24x128xbf16> to vector<240x128xbf16>
    %c0_5 = arith.constant 0 : index
    %c0_6 = arith.constant 0 : index
    %8 = vector.load %arg3[%c0_5, %c0_6] : memref<128x128xbf16, #tpu.memory_space<vmem>>, vector<128x128xbf16>
    %cst = arith.constant dense<0.000000e+00> : vector<240x128xf32>
    %9 = tpu.matmul %7, %8, %cst {dimension_numbers = #tpu.dot_dimension_numbers<[1], [0], [0], [1], [0, 0, 1, 1], [], []>} : vector<240x128xbf16>, vector<128x128xbf16>, vector<240x128xf32> -> vector<240x128xf32>
    %c0_7 = arith.constant 0 : index
    %c0_8 = arith.constant 0 : index
    %10 = vector.load %arg4[%c0_7, %c0_8] : memref<1x128xf32, #tpu.memory_space<vmem>>, vector<1x128xf32>
    %11 = vector.broadcast %10 : vector<1x128xf32> to vector<240x128xf32>
    %12 = arith.addf %9, %11 : vector<240x128xf32>
    %c0_9 = arith.constant 0 : index
    %c0_10 = arith.constant 0 : index
    %13 = vector.load %arg5[%c0_9, %c0_10] : memref<1x128xf32, #tpu.memory_space<vmem>>, vector<1x128xf32>
    %cst_11 = arith.constant 0.000000e+00 : f32
    %14 = vector.broadcast %cst_11 : f32 to vector<240x128xf32>
    %15 = arith.cmpf oge, %12, %14 : vector<240x128xf32>
    %16 = vector.broadcast %13 : vector<1x128xf32> to vector<240x128xf32>
    %17 = arith.mulf %16, %12 : vector<240x128xf32>
    %18 = arith.select %15, %12, %17 : vector<240x128xi1>, vector<240x128xf32>
    %19 = vector.shape_cast %18 : vector<240x128xf32> to vector<10x24x128xf32>
    %20 = tpu.iota {dimensions = array<i32: 0>} : vector<10x24xi32>
    %21 = vector.broadcast %1 : i32 to vector<10x24xi32>
    %22 = arith.addi %20, %21 : vector<10x24xi32>
    %23 = tpu.iota {dimensions = array<i32: 1>} : vector<10x24xi32>
    %c1_i32 = arith.constant 1 : i32
    %24 = vector.broadcast %c1_i32 : i32 to vector<10x24xi32>
    %25 = arith.cmpi sge, %22, %24 : vector<10x24xi32>
    %c16_i32 = arith.constant 16 : i32
    %26 = vector.broadcast %c16_i32 : i32 to vector<10x24xi32>
    %27 = arith.cmpi sle, %22, %26 : vector<10x24xi32>
    %28 = arith.andi %25, %27 : vector<10x24xi1>
    %c1_i32_12 = arith.constant 1 : i32
    %29 = vector.broadcast %c1_i32_12 : i32 to vector<10x24xi32>
    %30 = arith.cmpi sge, %23, %29 : vector<10x24xi32>
    %31 = arith.andi %28, %30 : vector<10x24xi1>
    %c16_i32_13 = arith.constant 16 : i32
    %32 = vector.broadcast %c16_i32_13 : i32 to vector<10x24xi32>
    %33 = arith.cmpi sle, %23, %32 : vector<10x24xi32>
    %34 = arith.andi %31, %33 : vector<10x24xi1>
    %35 = arith.extui %34 : vector<10x24xi1> to vector<10x24xi32>
    %36 = arith.sitofp %35 : vector<10x24xi32> to vector<10x24xf32>
    %37 = vector.shape_cast %36 : vector<10x24xf32> to vector<10x24x1xf32>
    %38 = vector.broadcast %37 : vector<10x24x1xf32> to vector<10x24x128xf32>
    %39 = arith.mulf %19, %38 : vector<10x24x128xf32>
    %cst_14 = arith.constant 0.000000e+00 : f32
    %40 = vector.broadcast %cst_14 : f32 to vector<8x16x128xf32>
    %cst_15 = arith.constant 0.000000e+00 : f32
    %41 = vector.broadcast %cst_15 : f32 to vector<8x24x128xf32>
    %c0_16 = arith.constant 0 : index
    %c0_17 = arith.constant 0 : index
    %42 = vector.load %arg6[%c0_16, %c0_17] : memref<16x128xf32, #tpu.memory_space<vmem>>, vector<1x128xf32>
    %43 = vector.shape_cast %42 : vector<1x128xf32> to vector<128xf32>
    %44 = vector.shape_cast %43 : vector<128xf32> to vector<1x1x128xf32>
    %45 = vector.extract_strided_slice %39 {offsets = [0, 0, 0], sizes = [8, 24, 128], strides = [1, 1, 1]} : vector<10x24x128xf32> to vector<8x24x128xf32>
    %46 = vector.broadcast %44 : vector<1x1x128xf32> to vector<8x24x128xf32>
    %47 = arith.mulf %46, %45 : vector<8x24x128xf32>
    %48 = arith.addf %41, %47 : vector<8x24x128xf32>
    %c3 = arith.constant 3 : index
    %c0_18 = arith.constant 0 : index
    %49 = vector.load %arg6[%c3, %c0_18] : memref<16x128xf32, #tpu.memory_space<vmem>>, vector<1x128xf32>
    %50 = vector.shape_cast %49 : vector<1x128xf32> to vector<128xf32>
    %51 = vector.shape_cast %50 : vector<128xf32> to vector<1x1x128xf32>
    %52 = vector.extract_strided_slice %39 {offsets = [1, 0, 0], sizes = [8, 24, 128], strides = [1, 1, 1]} : vector<10x24x128xf32> to vector<8x24x128xf32>
    %53 = vector.broadcast %51 : vector<1x1x128xf32> to vector<8x24x128xf32>
    %54 = arith.mulf %53, %52 : vector<8x24x128xf32>
    %55 = arith.addf %48, %54 : vector<8x24x128xf32>
    %c6 = arith.constant 6 : index
    %c0_19 = arith.constant 0 : index
    %56 = vector.load %arg6[%c6, %c0_19] : memref<16x128xf32, #tpu.memory_space<vmem>>, vector<1x128xf32>
    %57 = vector.shape_cast %56 : vector<1x128xf32> to vector<128xf32>
    %58 = vector.shape_cast %57 : vector<128xf32> to vector<1x1x128xf32>
    %59 = vector.extract_strided_slice %39 {offsets = [2, 0, 0], sizes = [8, 24, 128], strides = [1, 1, 1]} : vector<10x24x128xf32> to vector<8x24x128xf32>
    %60 = vector.broadcast %58 : vector<1x1x128xf32> to vector<8x24x128xf32>
    %61 = arith.mulf %60, %59 : vector<8x24x128xf32>
    %62 = arith.addf %55, %61 : vector<8x24x128xf32>
    %63 = vector.extract_strided_slice %62 {offsets = [0, 0, 0], sizes = [8, 16, 128], strides = [1, 1, 1]} : vector<8x24x128xf32> to vector<8x16x128xf32>
    %64 = arith.addf %40, %63 : vector<8x16x128xf32>
    %cst_20 = arith.constant 0.000000e+00 : f32
    %65 = vector.broadcast %cst_20 : f32 to vector<8x24x128xf32>
    %c1 = arith.constant 1 : index
    %c0_21 = arith.constant 0 : index
    %66 = vector.load %arg6[%c1, %c0_21] : memref<16x128xf32, #tpu.memory_space<vmem>>, vector<1x128xf32>
    %67 = vector.shape_cast %66 : vector<1x128xf32> to vector<128xf32>
    %68 = vector.shape_cast %67 : vector<128xf32> to vector<1x1x128xf32>
    %69 = vector.extract_strided_slice %39 {offsets = [0, 0, 0], sizes = [8, 24, 128], strides = [1, 1, 1]} : vector<10x24x128xf32> to vector<8x24x128xf32>
    %70 = vector.broadcast %68 : vector<1x1x128xf32> to vector<8x24x128xf32>
    %71 = arith.mulf %70, %69 : vector<8x24x128xf32>
    %72 = arith.addf %65, %71 : vector<8x24x128xf32>
    %c4 = arith.constant 4 : index
    %c0_22 = arith.constant 0 : index
    %73 = vector.load %arg6[%c4, %c0_22] : memref<16x128xf32, #tpu.memory_space<vmem>>, vector<1x128xf32>
    %74 = vector.shape_cast %73 : vector<1x128xf32> to vector<128xf32>
    %75 = vector.shape_cast %74 : vector<128xf32> to vector<1x1x128xf32>
    %76 = vector.extract_strided_slice %39 {offsets = [1, 0, 0], sizes = [8, 24, 128], strides = [1, 1, 1]} : vector<10x24x128xf32> to vector<8x24x128xf32>
    %77 = vector.broadcast %75 : vector<1x1x128xf32> to vector<8x24x128xf32>
    %78 = arith.mulf %77, %76 : vector<8x24x128xf32>
    %79 = arith.addf %72, %78 : vector<8x24x128xf32>
    %c7 = arith.constant 7 : index
    %c0_23 = arith.constant 0 : index
    %80 = vector.load %arg6[%c7, %c0_23] : memref<16x128xf32, #tpu.memory_space<vmem>>, vector<1x128xf32>
    %81 = vector.shape_cast %80 : vector<1x128xf32> to vector<128xf32>
    %82 = vector.shape_cast %81 : vector<128xf32> to vector<1x1x128xf32>
    %83 = vector.extract_strided_slice %39 {offsets = [2, 0, 0], sizes = [8, 24, 128], strides = [1, 1, 1]} : vector<10x24x128xf32> to vector<8x24x128xf32>
    %84 = vector.broadcast %82 : vector<1x1x128xf32> to vector<8x24x128xf32>
    %85 = arith.mulf %84, %83 : vector<8x24x128xf32>
    %86 = arith.addf %79, %85 : vector<8x24x128xf32>
    %87 = vector.extract_strided_slice %86 {offsets = [0, 1, 0], sizes = [8, 16, 128], strides = [1, 1, 1]} : vector<8x24x128xf32> to vector<8x16x128xf32>
    %88 = arith.addf %64, %87 : vector<8x16x128xf32>
    %cst_24 = arith.constant 0.000000e+00 : f32
    %89 = vector.broadcast %cst_24 : f32 to vector<8x24x128xf32>
    %c2 = arith.constant 2 : index
    %c0_25 = arith.constant 0 : index
    %90 = vector.load %arg6[%c2, %c0_25] : memref<16x128xf32, #tpu.memory_space<vmem>>, vector<1x128xf32>
    %91 = vector.shape_cast %90 : vector<1x128xf32> to vector<128xf32>
    %92 = vector.shape_cast %91 : vector<128xf32> to vector<1x1x128xf32>
    %93 = vector.extract_strided_slice %39 {offsets = [0, 0, 0], sizes = [8, 24, 128], strides = [1, 1, 1]} : vector<10x24x128xf32> to vector<8x24x128xf32>
    %94 = vector.broadcast %92 : vector<1x1x128xf32> to vector<8x24x128xf32>
    %95 = arith.mulf %94, %93 : vector<8x24x128xf32>
    %96 = arith.addf %89, %95 : vector<8x24x128xf32>
    %c5 = arith.constant 5 : index
    %c0_26 = arith.constant 0 : index
    %97 = vector.load %arg6[%c5, %c0_26] : memref<16x128xf32, #tpu.memory_space<vmem>>, vector<1x128xf32>
    %98 = vector.shape_cast %97 : vector<1x128xf32> to vector<128xf32>
    %99 = vector.shape_cast %98 : vector<128xf32> to vector<1x1x128xf32>
    %100 = vector.extract_strided_slice %39 {offsets = [1, 0, 0], sizes = [8, 24, 128], strides = [1, 1, 1]} : vector<10x24x128xf32> to vector<8x24x128xf32>
    %101 = vector.broadcast %99 : vector<1x1x128xf32> to vector<8x24x128xf32>
    %102 = arith.mulf %101, %100 : vector<8x24x128xf32>
    %103 = arith.addf %96, %102 : vector<8x24x128xf32>
    %c8 = arith.constant 8 : index
    %c0_27 = arith.constant 0 : index
    %104 = vector.load %arg6[%c8, %c0_27] : memref<16x128xf32, #tpu.memory_space<vmem>>, vector<1x128xf32>
    %105 = vector.shape_cast %104 : vector<1x128xf32> to vector<128xf32>
    %106 = vector.shape_cast %105 : vector<128xf32> to vector<1x1x128xf32>
    %107 = vector.extract_strided_slice %39 {offsets = [2, 0, 0], sizes = [8, 24, 128], strides = [1, 1, 1]} : vector<10x24x128xf32> to vector<8x24x128xf32>
    %108 = vector.broadcast %106 : vector<1x1x128xf32> to vector<8x24x128xf32>
    %109 = arith.mulf %108, %107 : vector<8x24x128xf32>
    %110 = arith.addf %103, %109 : vector<8x24x128xf32>
    %111 = vector.extract_strided_slice %110 {offsets = [0, 2, 0], sizes = [8, 16, 128], strides = [1, 1, 1]} : vector<8x24x128xf32> to vector<8x16x128xf32>
    %112 = arith.addf %88, %111 : vector<8x16x128xf32>
    %113 = vector.shape_cast %112 : vector<8x16x128xf32> to vector<128x128xf32>
    %c0_28 = arith.constant 0 : index
    %c0_29 = arith.constant 0 : index
    %114 = vector.load %arg7[%c0_28, %c0_29] : memref<1x128xf32, #tpu.memory_space<vmem>>, vector<1x128xf32>
    %115 = vector.broadcast %114 : vector<1x128xf32> to vector<128x128xf32>
    %116 = arith.addf %113, %115 : vector<128x128xf32>
    %c0_30 = arith.constant 0 : index
    %c0_31 = arith.constant 0 : index
    %117 = vector.load %arg8[%c0_30, %c0_31] : memref<1x128xf32, #tpu.memory_space<vmem>>, vector<1x128xf32>
    %cst_32 = arith.constant 0.000000e+00 : f32
    %118 = vector.broadcast %cst_32 : f32 to vector<128x128xf32>
    %119 = arith.cmpf oge, %116, %118 : vector<128x128xf32>
    %120 = vector.broadcast %117 : vector<1x128xf32> to vector<128x128xf32>
    %121 = arith.mulf %120, %116 : vector<128x128xf32>
    %122 = arith.select %119, %116, %121 : vector<128x128xi1>, vector<128x128xf32>
    %123 = arith.truncf %122 : vector<128x128xf32> to vector<128x128xbf16>
    %c0_33 = arith.constant 0 : index
    %c0_34 = arith.constant 0 : index
    %124 = vector.load %arg9[%c0_33, %c0_34] : memref<128x128xbf16, #tpu.memory_space<vmem>>, vector<128x128xbf16>
    %cst_35 = arith.constant dense<0.000000e+00> : vector<128x128xf32>
    %125 = tpu.matmul %123, %124, %cst_35 {dimension_numbers = #tpu.dot_dimension_numbers<[1], [0], [0], [1], [0, 0, 1, 1], [], []>} : vector<128x128xbf16>, vector<128x128xbf16>, vector<128x128xf32> -> vector<128x128xf32>
    %c0_36 = arith.constant 0 : index
    %c0_37 = arith.constant 0 : index
    %126 = vector.load %arg10[%c0_36, %c0_37] : memref<1x128xf32, #tpu.memory_space<vmem>>, vector<1x128xf32>
    %127 = vector.broadcast %126 : vector<1x128xf32> to vector<128x128xf32>
    %128 = arith.addf %125, %127 : vector<128x128xf32>
    %129 = vector.shape_cast %128 : vector<128x128xf32> to vector<8x16x128xf32>
    %130 = arith.truncf %129 : vector<8x16x128xf32> to vector<8x16x128xbf16>
    %c0_38 = arith.constant 0 : index
    %c0_39 = arith.constant 0 : index
    %c0_40 = arith.constant 0 : index
    %c0_41 = arith.constant 0 : index
    %131 = vector.load %arg11[%c0_38, %c0_39, %c0_40, %c0_41] : memref<1x8x16x128xbf16, #tpu.memory_space<vmem>>, vector<1x8x16x128xbf16>
    %132 = vector.shape_cast %131 : vector<1x8x16x128xbf16> to vector<8x16x128xbf16>
    %133 = vector.shape_cast %130 : vector<8x16x128xbf16> to vector<1x8x16x128xbf16>
    tpu.vector_store %arg11[%c0_38, %c0_39, %c0_40, %c0_41], %133 {strides = array<i32>} : memref<1x8x16x128xbf16, #tpu.memory_space<vmem>>, vector<1x8x16x128xbf16>,
    return
  }
  func.func @transform_1(%arg0: i32, %arg1: i32) -> (i32, i32) {
    %c0_i32 = arith.constant 0 : i32
    %c0_i32_0 = arith.constant 0 : i32
    %c0_i32_1 = arith.constant 0 : i32
    return %c0_i32, %c0_i32_0 : i32, i32
  }
  func.func @transform_2(%arg0: i32, %arg1: i32) -> (i32, i32) {
    %c0_i32 = arith.constant 0 : i32
    %c0_i32_0 = arith.constant 0 : i32
    %c0_i32_1 = arith.constant 0 : i32
    return %c0_i32, %c0_i32_0 : i32, i32
  }
  func.func @transform_3(%arg0: i32, %arg1: i32) -> (i32, i32) {
    %c0_i32 = arith.constant 0 : i32
    %c0_i32_0 = arith.constant 0 : i32
    %c0_i32_1 = arith.constant 0 : i32
    return %c0_i32, %c0_i32_0 : i32, i32
  }
  func.func @transform_4(%arg0: i32, %arg1: i32) -> (i32, i32) {
    %c0_i32 = arith.constant 0 : i32
    %c0_i32_0 = arith.constant 0 : i32
    %c0_i32_1 = arith.constant 0 : i32
    return %c0_i32, %c0_i32_0 : i32, i32
  }
  func.func @transform_5(%arg0: i32, %arg1: i32) -> (i32, i32) {
    %c0_i32 = arith.constant 0 : i32
    %c0_i32_0 = arith.constant 0 : i32
    %c0_i32_1 = arith.constant 0 : i32
    return %c0_i32, %c0_i32_0 : i32, i32
  }
  func.func @transform_6(%arg0: i32, %arg1: i32) -> (i32, i32) {
    %c0_i32 = arith.constant 0 : i32
    %c0_i32_0 = arith.constant 0 : i32
    %c0_i32_1 = arith.constant 0 : i32
    return %c0_i32, %c0_i32_0 : i32, i32
  }
  func.func @transform_7(%arg0: i32, %arg1: i32) -> (i32, i32) {
    %c0_i32 = arith.constant 0 : i32
    %c0_i32_0 = arith.constant 0 : i32
    %c0_i32_1 = arith.constant 0 : i32
    return %c0_i32, %c0_i32_0 : i32, i32
  }
  func.func @transform_8(%arg0: i32, %arg1: i32) -> (i32, i32) {
    %c0_i32 = arith.constant 0 : i32
    %c0_i32_0 = arith.constant 0 : i32
    %c0_i32_1 = arith.constant 0 : i32
    return %c0_i32, %c0_i32_0 : i32, i32
  }
  func.func @transform_9(%arg0: i32, %arg1: i32) -> (i32, i32, i32, i32) {
    %c0_i32 = arith.constant 0 : i32
    %c0_i32_0 = arith.constant 0 : i32
    %c0_i32_1 = arith.constant 0 : i32
    return %arg0, %arg1, %c0_i32, %c0_i32_0 : i32, i32, i32, i32
  }
}

</mosaic_0001>

<llo_original>
// kernel: tpu_custom_call.1
$region0: #{tpu_custom_call.1}
  #allocation0 [shape = 'u32[]', space=smem, size = 0x4, offset = 0x4, fixed_abs, tag = 'smem constant byte address 0x4 - core index']
  #allocation1 [shape = 'u32[72,128]{1,0:T(1,128)}', space=vmem, size = 0x9000, scoped, tag = 'internal scratch']
  #allocation2 [shape = 'bf16[10,24,128]{2,1,0:T(8,128)(2,1)}', space=vmem, size = 0xf000, scoped, tag = 'scratch operand']
  #allocation3 [shape = 's32[1]{0}', space=sflag, size = 0x4, scoped, tag = 'scratch operand']
  #allocation11 [shape = 's32[]', space=sflag, size = 0x4, offset = 0, fixed_abs, tag = 'sflag constant byte address 0x0 - dummy sync flag']
  #allocation12 [shape = 's32[]', space=sflag, size = 0x4, offset = 0, fixed_abs, tag = 'sflag constant byte address 0x0 - dummy sync flag']
  #allocation13 [shape = 'u32[]', space=smem, size = 0x4, offset = 0x44, fixed_abs, tag = 'smem constant byte address 0x44 - assertion arg 0']
  #allocation14 [shape = 'u32[]', space=smem, size = 0x4, offset = 0x48, fixed_abs, tag = 'smem constant byte address 0x48 - assertion arg 1']
  %s0 = inlined_call_operand.hbm [shape: bf16[2,18,24,128], index: 0, kind: input, shape index: {}]
  %s1 = inlined_call_operand.hbm [shape: bf16[128,128], index: 1, kind: input, shape index: {}]
  %s2 = inlined_call_operand.vmem [shape: f32[1,128], index: 2, kind: input, shape index: {}]
  %s3 = inlined_call_operand.vmem [shape: f32[1,128], index: 3, kind: input, shape index: {}]
  %s4 = inlined_call_operand.hbm [shape: f32[16,128], index: 4, kind: input, shape index: {}]
  %s5 = inlined_call_operand.vmem [shape: f32[1,128], index: 5, kind: input, shape index: {}]
  %s6 = inlined_call_operand.vmem [shape: f32[1,128], index: 6, kind: input, shape index: {}]
  %s7 = inlined_call_operand.hbm [shape: bf16[128,128], index: 7, kind: input, shape index: {}]
  %s8 = inlined_call_operand.vmem [shape: f32[1,128], index: 8, kind: input, shape index: {}]
  %s9 = inlined_call_operand.hbm [shape: bf16[2,16,16,128], index: 9, kind: output, shape index: {}]
  %s10 = sld [smem:[#allocation0]]
  $region81: #{tpu_custom_call.1} parent=0
    _
  %s12 = ssub.s32 1, %s10
  %s13 = scalar_select 0, %s12, %s10
  $region1: #{tpu_custom_call.1} parent=0
    #allocation4 [shape = 'u8[32768]{0}', space=vmem, size = 0x8000, scoped, tag = 'input window, operand 1, single buffered']
    #allocation5 [shape = 's32[2]{0}', space=sflag, size = 0x8, scoped, tag = 'scoped memory for tpu_custom_call.1']
    #allocation6 [shape = 's32[2]{0}', space=sflag, size = 0x8, scoped, tag = 'scoped memory for tpu_custom_call.1']
    #allocation7 [shape = 'u8[8192]{0}', space=vmem, size = 0x2000, scoped, tag = 'input window, operand 4, single buffered']
    #allocation8 [shape = 's32[1]{0}', space=sflag, size = 0x4, scoped, tag = 'scoped memory for tpu_custom_call.1']
    #allocation9 [shape = 'u8[32768]{0}', space=vmem, size = 0x8000, scoped, tag = 'input window, operand 7, single buffered']
    #allocation10 [shape = 'u8[65536]{0}', space=vmem, size = 0x10000, scoped, tag = 'output window, operand 0']
    %14 = vsyncpa [#allocation5], 0
    %15 = vsyncpa [#allocation8], 0
    %16 = vsyncpa [#allocation6], 0
    %s17 = scalar_lea.sflag [#allocation6], 1
    %18 = vsyncpa %s17, 0
    loop: start=0, step=1, limit=6
    $region2: #{tpu_custom_call.1} parent=1 // loop_pre_header
      _
    $region3: #{tpu_custom_call.1} parent=1 // loop_header
      %s20 = sphi 0, %s24
      %p21 = scmp.ge.s32.totalorder %s20, 6
      %s27 = sphi 0, %s39
      %s28 = sphi 0, %s35
      %s29 = sphi 0, %s27
      %s30 = sphi 0, %s28
      %s31 = sphi 0, %s29
      %s32 = sphi 0, %s30
      %s40 = sphi 0, %s40
      %s42 = sphi 0, %s40
      %s43 = sphi 0, %s42
      %s57 = sphi 0, %s43
      %s61 = sphi 0, %s61
      %s63 = sphi 0, %s61
      %s64 = sphi 0, %s63
      %s78 = sphi 0, %s64
      %s82 = sphi 0, %s82
      %s84 = sphi 0, %s82
      %s85 = sphi 0, %s84
      %s99 = sphi 0, %s85
      %s103 = sphi 0, %s103
      %s105 = sphi 0, %s103
      %s106 = sphi 0, %s105
      %s120 = sphi 0, %s106
      %s124 = sphi 0, %s124
      %s126 = sphi 0, %s124
      %s127 = sphi 0, %s126
      %s141 = sphi 0, %s127
      %s145 = sphi 0, %s145
      %s147 = sphi 0, %s145
      %s148 = sphi 0, %s147
      %s162 = sphi 0, %s148
      %s166 = sphi 0, %s166
      %s168 = sphi 0, %s166
      %s169 = sphi 0, %s168
      %s183 = sphi 0, %s169
      %s187 = sphi 0, %s187
      %s189 = sphi 0, %s187
      %s190 = sphi 0, %s189
      %s204 = sphi 0, %s190
      %s212 = sphi 0, %s214
      %s215 = sphi 0, %s212
      %s216 = sphi 0, %s215
      %s232 = sphi 0, %s216
    $region4: #{tpu_custom_call.1} parent=1 // loop_header_branch
      %23 = sbr.rel (%p21) target = $region8
    $region5: #{tpu_custom_call.1} parent=1 // loop_body
      %s25 = ssub.s32 %s20, 1
      %s26 = ssub.s32 %s20, 2
      %s33 = sadd.s32 1, %s28
      %p34 = scmp.ge.s32.totalorder %s33, 2
      %s35 = scalar_select %p34, 0, %s33
      %s36 = sadd.s32 1, %s27
      %s37 = scalar_select %p34, %s36, %s27
      %p38 = scmp.ge.s32.totalorder %s37, 2
      %s39 = scalar_select %p38, 0, %s37
      %s41 = sadd.s32 %s40, 1
      %p44 = scmp.eq.s32.totalorder %s20, 3
      %p45 = scmp.ne.s32.totalorder %s40, %s42
      %p46 = scmp.eq.s32.totalorder %s20, 0
      %p47 = por %p45, %p46
      %p48 = scmp.ne.s32.totalorder %s40, %s42
      %p49 = scmp.eq.s32.totalorder %s25, 3
      %p50 = por %p48, %p49
      %p51 = scmp.ne.s32.totalorder %s42, %s43
      %p52 = scmp.eq.s32.totalorder %s25, 0
      %p53 = por %p51, %p52
      %p54 = scmp.ne.s32.totalorder %s42, %s43
      %p55 = scmp.eq.s32.totalorder %s26, 3
      %p56 = por %p54, %p55
      %p58 = scmp.ne.s32.totalorder %s43, %s57
      %p59 = scmp.eq.s32.totalorder %s26, 0
      %p60 = por %p58, %p59
      %s62 = sadd.s32 %s61, 1
      %p65 = scmp.eq.s32.totalorder %s20, 3
      %p66 = scmp.ne.s32.totalorder %s61, %s63
      %p67 = scmp.eq.s32.totalorder %s20, 0
      %p68 = por %p66, %p67
      %p69 = scmp.ne.s32.totalorder %s61, %s63
      %p70 = scmp.eq.s32.totalorder %s25, 3
      %p71 = por %p69, %p70
      %p72 = scmp.ne.s32.totalorder %s63, %s64
      %p73 = scmp.eq.s32.totalorder %s25, 0
      %p74 = por %p72, %p73
      %p75 = scmp.ne.s32.totalorder %s63, %s64
      %p76 = scmp.eq.s32.totalorder %s26, 3
      %p77 = por %p75, %p76
      %p79 = scmp.ne.s32.totalorder %s64, %s78
      %p80 = scmp.eq.s32.totalorder %s26, 0
      %p81 = por %p79, %p80
      %s83 = sadd.s32 %s82, 1
      %p86 = scmp.eq.s32.totalorder %s20, 3
      %p87 = scmp.ne.s32.totalorder %s82, %s84
      %p88 = scmp.eq.s32.totalorder %s20, 0
      %p89 = por %p87, %p88
      %p90 = scmp.ne.s32.totalorder %s82, %s84
      %p91 = scmp.eq.s32.totalorder %s25, 3
      %p92 = por %p90, %p91
      %p93 = scmp.ne.s32.totalorder %s84, %s85
      %p94 = scmp.eq.s32.totalorder %s25, 0
      %p95 = por %p93, %p94
      %p96 = scmp.ne.s32.totalorder %s84, %s85
      %p97 = scmp.eq.s32.totalorder %s26, 3
      %p98 = por %p96, %p97
      %p100 = scmp.ne.s32.totalorder %s85, %s99
      %p101 = scmp.eq.s32.totalorder %s26, 0
      %p102 = por %p100, %p101
      %s104 = sadd.s32 %s103, 1
      %p107 = scmp.eq.s32.totalorder %s20, 3
      %p108 = scmp.ne.s32.totalorder %s103, %s105
      %p109 = scmp.eq.s32.totalorder %s20, 0
      %p110 = por %p108, %p109
      %p111 = scmp.ne.s32.totalorder %s103, %s105
      %p112 = scmp.eq.s32.totalorder %s25, 3
      %p113 = por %p111, %p112
      %p114 = scmp.ne.s32.totalorder %s105, %s106
      %p115 = scmp.eq.s32.totalorder %s25, 0
      %p116 = por %p114, %p115
      %p117 = scmp.ne.s32.totalorder %s105, %s106
      %p118 = scmp.eq.s32.totalorder %s26, 3
      %p119 = por %p117, %p118
      %p121 = scmp.ne.s32.totalorder %s106, %s120
      %p122 = scmp.eq.s32.totalorder %s26, 0
      %p123 = por %p121, %p122
      %s125 = sadd.s32 %s124, 1
      %p128 = scmp.eq.s32.totalorder %s20, 3
      %p129 = scmp.ne.s32.totalorder %s124, %s126
      %p130 = scmp.eq.s32.totalorder %s20, 0
      %p131 = por %p129, %p130
      %p132 = scmp.ne.s32.totalorder %s124, %s126
      %p133 = scmp.eq.s32.totalorder %s25, 3
      %p134 = por %p132, %p133
      %p135 = scmp.ne.s32.totalorder %s126, %s127
      %p136 = scmp.eq.s32.totalorder %s25, 0
      %p137 = por %p135, %p136
      %p138 = scmp.ne.s32.totalorder %s126, %s127
      %p139 = scmp.eq.s32.totalorder %s26, 3
      %p140 = por %p138, %p139
      %p142 = scmp.ne.s32.totalorder %s127, %s141
      %p143 = scmp.eq.s32.totalorder %s26, 0
      %p144 = por %p142, %p143
      %s146 = sadd.s32 %s145, 1
      %p149 = scmp.eq.s32.totalorder %s20, 3
      %p150 = scmp.ne.s32.totalorder %s145, %s147
      %p151 = scmp.eq.s32.totalorder %s20, 0
      %p152 = por %p150, %p151
      %p153 = scmp.ne.s32.totalorder %s145, %s147
      %p154 = scmp.eq.s32.totalorder %s25, 3
      %p155 = por %p153, %p154
      %p156 = scmp.ne.s32.totalorder %s147, %s148
      %p157 = scmp.eq.s32.totalorder %s25, 0
      %p158 = por %p156, %p157
      %p159 = scmp.ne.s32.totalorder %s147, %s148
      %p160 = scmp.eq.s32.totalorder %s26, 3
      %p161 = por %p159, %p160
      %p163 = scmp.ne.s32.totalorder %s148, %s162
      %p164 = scmp.eq.s32.totalorder %s26, 0
      %p165 = por %p163, %p164
      %s167 = sadd.s32 %s166, 1
      %p170 = scmp.eq.s32.totalorder %s20, 3
      %p171 = scmp.ne.s32.totalorder %s166, %s168
      %p172 = scmp.eq.s32.totalorder %s20, 0
      %p173 = por %p171, %p172
      %p174 = scmp.ne.s32.totalorder %s166, %s168
      %p175 = scmp.eq.s32.totalorder %s25, 3
      %p176 = por %p174, %p175
      %p177 = scmp.ne.s32.totalorder %s168, %s169
      %p178 = scmp.eq.s32.totalorder %s25, 0
      %p179 = por %p177, %p178
      %p180 = scmp.ne.s32.totalorder %s168, %s169
      %p181 = scmp.eq.s32.totalorder %s26, 3
      %p182 = por %p180, %p181
      %p184 = scmp.ne.s32.totalorder %s169, %s183
      %p185 = scmp.eq.s32.totalorder %s26, 0
      %p186 = por %p184, %p185
      %s188 = sadd.s32 %s187, 1
      %p191 = scmp.eq.s32.totalorder %s20, 3
      %p192 = scmp.ne.s32.totalorder %s187, %s189
      %p193 = scmp.eq.s32.totalorder %s20, 0
      %p194 = por %p192, %p193
      %p195 = scmp.ne.s32.totalorder %s187, %s189
      %p196 = scmp.eq.s32.totalorder %s25, 3
      %p197 = por %p195, %p196
      %p198 = scmp.ne.s32.totalorder %s189, %s190
      %p199 = scmp.eq.s32.totalorder %s25, 0
      %p200 = por %p198, %p199
      %p201 = scmp.ne.s32.totalorder %s189, %s190
      %p202 = scmp.eq.s32.totalorder %s26, 3
      %p203 = por %p201, %p202
      %p205 = scmp.ne.s32.totalorder %s190, %s204
      %p206 = scmp.eq.s32.totalorder %s26, 0
      %p207 = por %p205, %p206
      %s208 = ssub.s32 %s27, %s39
      %s209 = ssub.s32 %s28, %s35
      %s210 = sor.u32 %s208, %s209
      %p211 = scmp.eq.s32.totalorder %s210, 0
      %s213 = sadd.s32 %s212, 1
      %s214 = scalar_select %p211, %s212, %s213
      %p217 = pneg %p211
      %p218 = scmp.eq.s32.totalorder %s20, 3
      %p219 = por %p217, %p218
      %p220 = scmp.ne.s32.totalorder %s212, %s215
      %p221 = scmp.eq.s32.totalorder %s20, 0
      %p222 = por %p220, %p221
      %p223 = scmp.ne.s32.totalorder %s212, %s215
      %p224 = scmp.eq.s32.totalorder %s25, 3
      %p225 = por %p223, %p224
      %p226 = scmp.ne.s32.totalorder %s215, %s216
      %p227 = scmp.eq.s32.totalorder %s25, 0
      %p228 = por %p226, %p227
      %p229 = scmp.ne.s32.totalorder %s215, %s216
      %p230 = scmp.eq.s32.totalorder %s26, 3
      %p231 = por %p229, %p230
      %p233 = scmp.ne.s32.totalorder %s216, %s232
      %p234 = scmp.eq.s32.totalorder %s26, 0
      %p235 = por %p233, %p234
      %p236 = scmp.le.s32.totalorder 1, %s20
      %p237 = scmp.lt.s32.totalorder %s20, 5
      %p238 = pnand %p236, %p237
      %p239 = pneg %p238
      // Predicated region
      $region9: #{tpu_custom_call.1} parent=5 // pred_check
        _
      $region10: #{tpu_custom_call.1} parent=5 // pred_check_branch
        %241 = sbr.rel (%p238) target = $region12
      $region11: #{tpu_custom_call.1} parent=5 // pred_region
        %s242 = ssub.s32 %s20, 1
        // Predicated region
        $region13: #{tpu_custom_call.1} parent=11 // pred_check
          %p243 = pneg %p53
        $region14: #{tpu_custom_call.1} parent=11 // pred_check_branch
          %245 = sbr.rel (%p243) target = $region16
        $region15: #{tpu_custom_call.1} parent=11 // pred_region
          %247 = vsyncadd [#allocation5], 0
          %s248 = sshll.u32 %s1, 4
          %s249 = int_to_ptr.hbm [resolvable:$true] %s248
          %s250 = sshll.u32 [#allocation4], 4
          %s251 = int_to_ptr.vmem [resolvable:$true] %s250
          %256 = dma.hbm_to_vmem [thread:$0]  %s249, 1024, %s251, [#allocation5], 64, 64, 4
        $region16: #{tpu_custom_call.1} parent=11 // pred_fallthru
          _
        // Predicated region
        $region17: #{tpu_custom_call.1} parent=11 // pred_check
          %p257 = pneg %p74
        $region18: #{tpu_custom_call.1} parent=11 // pred_check_branch
          %259 = sbr.rel (%p257) target = $region20
        $region19: #{tpu_custom_call.1} parent=11 // pred_region
          _
        $region20: #{tpu_custom_call.1} parent=11 // pred_fallthru
          _
        // Predicated region
        $region21: #{tpu_custom_call.1} parent=11 // pred_check
          %p260 = pneg %p95
        $region22: #{tpu_custom_call.1} parent=11 // pred_check_branch
          %262 = sbr.rel (%p260) target = $region24
        $region23: #{tpu_custom_call.1} parent=11 // pred_region
          _
        $region24: #{tpu_custom_call.1} parent=11 // pred_fallthru
          _
        // Predicated region
        $region25: #{tpu_custom_call.1} parent=11 // pred_check
          %p263 = pneg %p116
        $region26: #{tpu_custom_call.1} parent=11 // pred_check_branch
          %265 = sbr.rel (%p263) target = $region28
        $region27: #{tpu_custom_call.1} parent=11 // pred_region
          %267 = vsyncadd [#allocation8], 0
          %s268 = sshll.u32 %s4, 4
          %s269 = int_to_ptr.hbm [resolvable:$true] %s268
          %s270 = sshll.u32 [#allocation7], 4
          %s271 = int_to_ptr.vmem [resolvable:$true] %s270
          %276 = dma.hbm_to_vmem [thread:$0]  %s269, 256, %s271, [#allocation8], 128, 128, 8
        $region28: #{tpu_custom_call.1} parent=11 // pred_fallthru
          _
        // Predicated region
        $region29: #{tpu_custom_call.1} parent=11 // pred_check
          %p277 = pneg %p137
        $region30: #{tpu_custom_call.1} parent=11 // pred_check_branch
          %279 = sbr.rel (%p277) target = $region32
        $region31: #{tpu_custom_call.1} parent=11 // pred_region
          _
        $region32: #{tpu_custom_call.1} parent=11 // pred_fallthru
          _
        // Predicated region
        $region33: #{tpu_custom_call.1} parent=11 // pred_check
          %p280 = pneg %p158
        $region34: #{tpu_custom_call.1} parent=11 // pred_check_branch
          %282 = sbr.rel (%p280) target = $region36
        $region35: #{tpu_custom_call.1} parent=11 // pred_region
          _
        $region36: #{tpu_custom_call.1} parent=11 // pred_fallthru
          _
        // Predicated region
        $region37: #{tpu_custom_call.1} parent=11 // pred_check
          %p283 = pneg %p179
        $region38: #{tpu_custom_call.1} parent=11 // pred_check_branch
          %285 = sbr.rel (%p283) target = $region40
        $region39: #{tpu_custom_call.1} parent=11 // pred_region
          %287 = vsyncadd [#allocation8], 0
          %s288 = sshll.u32 %s7, 4
          %s289 = int_to_ptr.hbm [resolvable:$true] %s288
          %s290 = sshll.u32 [#allocation9], 4
          %s291 = int_to_ptr.vmem [resolvable:$true] %s290
          %296 = dma.hbm_to_vmem [thread:$0]  %s289, 1024, %s291, [#allocation8], 64, 64, 4
        $region40: #{tpu_custom_call.1} parent=11 // pred_fallthru
          _
        // Predicated region
        $region41: #{tpu_custom_call.1} parent=11 // pred_check
          %p297 = pneg %p200
        $region42: #{tpu_custom_call.1} parent=11 // pred_check_branch
          %299 = sbr.rel (%p297) target = $region44
        $region43: #{tpu_custom_call.1} parent=11 // pred_region
          _
        $region44: #{tpu_custom_call.1} parent=11 // pred_fallthru
          _
      $region12: #{tpu_custom_call.1} parent=5 // pred_fallthru
        _
      %p300 = scmp.lt.s32.totalorder %s20, 4
      // Predicated region
      $region45: #{tpu_custom_call.1} parent=5 // pred_check
        %p301 = pneg %p300
      $region46: #{tpu_custom_call.1} parent=5 // pred_check_branch
        %303 = sbr.rel (%p301) target = $region48
      $region47: #{tpu_custom_call.1} parent=5 // pred_region
        _
      $region48: #{tpu_custom_call.1} parent=5 // pred_fallthru
        _
      %p304 = scmp.le.s32.totalorder 1, %s20
      %p305 = scmp.lt.s32.totalorder %s20, 5
      %p306 = pnand %p304, %p305
      %p307 = pneg %p306
      // Predicated region
      $region49: #{tpu_custom_call.1} parent=5 // pred_check
        _
      $region50: #{tpu_custom_call.1} parent=5 // pred_check_branch
        %309 = sbr.rel (%p306) target = $region52
      $region51: #{tpu_custom_call.1} parent=5 // pred_region
        %s310 = ssub.s32 %s20, 1
        // Predicated region
        $region53: #{tpu_custom_call.1} parent=51 // pred_check
          %p311 = pneg %p53
        $region54: #{tpu_custom_call.1} parent=51 // pred_check_branch
          %313 = sbr.rel (%p311) target = $region56
        $region55: #{tpu_custom_call.1} parent=51 // pred_region
          %315 = dma.done [#allocation5], 1024
        $region56: #{tpu_custom_call.1} parent=51 // pred_fallthru
          _
        // Predicated region
        $region57: #{tpu_custom_call.1} parent=51 // pred_check
          %p316 = pneg %p116
        $region58: #{tpu_custom_call.1} parent=51 // pred_check_branch
          %318 = sbr.rel (%p316) target = $region60
        $region59: #{tpu_custom_call.1} parent=51 // pred_region
          %320 = dma.done [#allocation8], 256
        $region60: #{tpu_custom_call.1} parent=51 // pred_fallthru
          _
        // Predicated region
        $region61: #{tpu_custom_call.1} parent=51 // pred_check
          %p321 = pneg %p179
        $region62: #{tpu_custom_call.1} parent=51 // pred_check_branch
          %323 = sbr.rel (%p321) target = $region64
        $region63: #{tpu_custom_call.1} parent=51 // pred_region
          %325 = dma.done [#allocation8], 1024
        $region64: #{tpu_custom_call.1} parent=51 // pred_fallthru
          _
        %p326 = pneg %p53
        %p327 = pneg %p50
        %p328 = pneg %p74
        %p329 = pneg %p71
        %p330 = pneg %p95
        %p331 = pneg %p92
        %p332 = pneg %p116
        %p333 = pneg %p113
        %p334 = pneg %p137
        %p335 = pneg %p134
        %p336 = pneg %p158
        %p337 = pneg %p155
        %p338 = pneg %p179
        %p339 = pneg %p176
        %p340 = pneg %p200
        %p341 = pneg %p197
        %p342 = pneg %p228
        %p343 = pneg %p225
        %s344 = sand.u32 %s215, 1
        %s345 = scalar_lea.sflag [#allocation6], %s344
        %s346 = sand.u32 %s215, 1
        %s347 = smul.addr %s346, 64
        %s348 = scalar_lea.vmem [#allocation10], %s347
        %s349 = smul.u32 8, %s30
        %s350 = smul.u32 %s30, 8
        %s351 = smul.u32 %s350, 3
        %s352 = smul.u32 %s29, 54
        %s353 = sadd.s32 %s351, %s352
        %s354 = smul.addr %s353, 4
        %s355 = scalar_lea.hbm %s0, %s354
        // Predicated region
        $region65: #{tpu_custom_call.1} parent=51 // pred_check
          _
        $region66: #{tpu_custom_call.1} parent=51 // pred_check_branch
          %357 = sbr.rel target = $region68
        $region67: #{tpu_custom_call.1} parent=51 // pred_region
          %358 = sst [smem:[#allocation13]] [#allocation12]
          %359 = sst [smem:[#allocation14]] [#allocation11]
        $region68: #{tpu_custom_call.1} parent=51 // pred_fallthru
          _
        %361 = shalt.err (0)
        %s363 = sshll.u32 %s355, 4
        %s364 = int_to_ptr.hbm [resolvable:$true] %s363
        %s365 = sshll.u32 [#allocation2], 4
        %s366 = int_to_ptr.vmem [resolvable:$true] %s365
        %368 = dma.hbm_to_vmem [thread:$0]  %s364, 1920, %s366, [#allocation3]
        %s369 = smul.u32 4, 10
        %s370 = smul.u32 %s369, 3
        %s371 = smul.u32 %s370, 1
        %s372 = sshll.u32 %s371, 4
        %373 = dma.done [#allocation3], %s372
        %v374 = vld [vmem:[#allocation2] sm:$0xf]
        %v375 = vld [vmem:[#allocation2 + $0x4] sm:$0xf]
        %v376 = vld [vmem:[#allocation2 + $0x8] sm:$0xf]
        %v377 = vld [vmem:[#allocation2 + $0xc] sm:$0xf]
        %v378 = vld [vmem:[#allocation2 + $0x10] sm:$0xf]
        %v379 = vld [vmem:[#allocation2 + $0x14] sm:$0xf]
        %v380 = vld [vmem:[#allocation2 + $0x18] sm:$0xf]
        %v381 = vld [vmem:[#allocation2 + $0x1c] sm:$0xf]
        %v382 = vld [vmem:[#allocation2 + $0x20] sm:$0xf]
        %v383 = vld [vmem:[#allocation2 + $0x24] sm:$0xf]
        %v384 = vld [vmem:[#allocation2 + $0x28] sm:$0xf]
        %v385 = vld [vmem:[#allocation2 + $0x2c] sm:$0xf]
        %v386 = vld [vmem:[#allocation2 + $0x30] sm:$0xf]
        %v387 = vld [vmem:[#allocation2 + $0x34] sm:$0xf]
        %v388 = vld [vmem:[#allocation2 + $0x38] sm:$0xf]
        %v389 = vld [vmem:[#allocation2 + $0x3c] sm:$0xf]
        %v390 = vld [vmem:[#allocation2 + $0x40] sm:$0xf]
        %v391 = vld [vmem:[#allocation2 + $0x44] sm:$0xf]
        %v392 = vld [vmem:[#allocation2 + $0x48] sm:$0xf]
        %v393 = vld [vmem:[#allocation2 + $0x4c] sm:$0xf]
        %v394 = vld [vmem:[#allocation2 + $0x50] sm:$0xf]
        %v395 = vld [vmem:[#allocation2 + $0x54] sm:$0xf]
        %v396 = vld [vmem:[#allocation2 + $0x58] sm:$0xf]
        %v397 = vld [vmem:[#allocation2 + $0x5c] sm:$0xf]
        %v398 = vld [vmem:[#allocation2 + $0x60] sm:$0xf]
        %v399 = vld [vmem:[#allocation2 + $0x64] sm:$0xf]
        %v400 = vld [vmem:[#allocation2 + $0x68] sm:$0xf]
        %v401 = vld [vmem:[#allocation2 + $0x6c] sm:$0xf]
        %v402 = vld [vmem:[#allocation2 + $0x70] sm:$0xf]
        %v403 = vld [vmem:[#allocation2 + $0x74] sm:$0xf]
        %v404 = vld [vmem:[#allocation4] sm:$0xf]
        %v405 = vld [vmem:[#allocation4 + $0x4] sm:$0xf]
        %v406 = vld [vmem:[#allocation4 + $0x8] sm:$0xf]
        %v407 = vld [vmem:[#allocation4 + $0xc] sm:$0xf]
        %v408 = vld [vmem:[#allocation4 + $0x10] sm:$0xf]
        %v409 = vld [vmem:[#allocation4 + $0x14] sm:$0xf]
        %v410 = vld [vmem:[#allocation4 + $0x18] sm:$0xf]
        %v411 = vld [vmem:[#allocation4 + $0x1c] sm:$0xf]
        %v412 = vld [vmem:[#allocation4 + $0x20] sm:$0xf]
        %v413 = vld [vmem:[#allocation4 + $0x24] sm:$0xf]
        %v414 = vld [vmem:[#allocation4 + $0x28] sm:$0xf]
        %v415 = vld [vmem:[#allocation4 + $0x2c] sm:$0xf]
        %v416 = vld [vmem:[#allocation4 + $0x30] sm:$0xf]
        %v417 = vld [vmem:[#allocation4 + $0x34] sm:$0xf]
        %v418 = vld [vmem:[#allocation4 + $0x38] sm:$0xf]
        %v419 = vld [vmem:[#allocation4 + $0x3c] sm:$0xf]
        %v420 = vld [vmem:[%s2] sm:$0x1]
        %v422 = vperm.slane %v420, 0
        %v454 = vunpack.c.l.b16 %v374
        %v455 = vunpack.c.l.b16 %v375
        %v456 = vunpack.c.l.b16 %v376
        %v457 = vunpack.c.l.b16 %v377
        %v458 = vunpack.c.l.b16 %v378
        %v459 = vunpack.c.l.b16 %v379
        %v460 = vunpack.c.l.b16 %v380
        %v461 = vunpack.c.l.b16 %v381
        %v462 = vunpack.c.l.b16 %v382
        %v463 = vunpack.c.l.b16 %v383
        %v464 = vunpack.c.l.b16 %v384
        %v465 = vunpack.c.l.b16 %v385
        %v466 = vunpack.c.l.b16 %v386
        %v467 = vunpack.c.l.b16 %v387
        %v468 = vunpack.c.l.b16 %v388
        %v469 = vunpack.c.l.b16 %v389
        %v470 = vunpack.c.l.b16 %v390
        %v471 = vunpack.c.l.b16 %v391
        %v472 = vunpack.c.l.b16 %v392
        %v473 = vunpack.c.l.b16 %v393
        %v474 = vunpack.c.l.b16 %v394
        %v475 = vunpack.c.l.b16 %v395
        %v476 = vunpack.c.l.b16 %v396
        %v477 = vunpack.c.l.b16 %v397
        %v478 = vunpack.c.l.b16 %v398
        %v479 = vunpack.c.l.b16 %v399
        %v480 = vunpack.c.l.b16 %v400
        %v481 = vunpack.c.l.b16 %v401
        %v482 = vunpack.c.l.b16 %v402
        %v483 = vunpack.c.l.b16 %v403
        %v484 = vpack.c.b16 %v455, %v454
        %v485 = vpack.c.b16 %v457, %v456
        %v486 = vpack.c.b16 %v459, %v458
        %v487 = vpack.c.b16 %v461, %v460
        %v488 = vpack.c.b16 %v463, %v462
        %v489 = vpack.c.b16 %v465, %v464
        %v490 = vpack.c.b16 %v467, %v466
        %v491 = vpack.c.b16 %v469, %v468
        %v492 = vpack.c.b16 %v471, %v470
        %v493 = vpack.c.b16 %v473, %v472
        %v494 = vpack.c.b16 %v475, %v474
        %v495 = vpack.c.b16 %v477, %v476
        %v496 = vpack.c.b16 %v479, %v478
        %v497 = vpack.c.b16 %v481, %v480
        %v498 = vpack.c.b16 %v483, %v482
        %v530 = vunpack.c.l.b16 %v404
        %v531 = vunpack.c.l.b16 %v405
        %v532 = vunpack.c.l.b16 %v406
        %v533 = vunpack.c.l.b16 %v407
        %v534 = vunpack.c.l.b16 %v408
        %v535 = vunpack.c.l.b16 %v409
        %v536 = vunpack.c.l.b16 %v410
        %v537 = vunpack.c.l.b16 %v411
        %v538 = vunpack.c.l.b16 %v412
        %v539 = vunpack.c.l.b16 %v413
        %v540 = vunpack.c.l.b16 %v414
        %v541 = vunpack.c.l.b16 %v415
        %v542 = vunpack.c.l.b16 %v416
        %v543 = vunpack.c.l.b16 %v417
        %v544 = vunpack.c.l.b16 %v418
        %v545 = vunpack.c.l.b16 %v419
        %v546 = vpack.c.b16 %v531, %v530
        %v547 = vpack.c.b16 %v533, %v532
        %v548 = vpack.c.b16 %v535, %v534
        %v549 = vpack.c.b16 %v537, %v536
        %v550 = vpack.c.b16 %v539, %v538
        %v551 = vpack.c.b16 %v541, %v540
        %v552 = vpack.c.b16 %v543, %v542
        %v553 = vpack.c.b16 %v545, %v544
        %562 = vmatpush.bf16.msra.mxu0 %v553
        %563 = vmatpush.bf16.msra.mxu0 %v552
        %564 = vmatpush.bf16.msra.mxu0 %v551
        %565 = vmatpush.bf16.msra.mxu0 %v550
        %566 = vmatpush.bf16.msra.mxu0 %v549
        %567 = vmatpush.bf16.msra.mxu0 %v548
        %568 = vmatpush.bf16.msra.mxu0 %v547
        %569 = vmatpush.bf16.msra.mxu0 %v546
        %570 = vmatmul.bf16.gmra.mxu0 %v484
        %v571 = vpop.f32.mrf.mxu0
        %v572 = vadd.f32 %v422, %v571
        %v573 = vpop.f32.mrf.mxu0
        %v574 = vadd.f32 %v422, %v573
        %575 = vmatmul.bf16.gmra.mxu0 %v485
        %v576 = vpop.f32.mrf.mxu0
        %v577 = vadd.f32 %v422, %v576
        %v578 = vpop.f32.mrf.mxu0
        %v579 = vadd.f32 %v422, %v578
        %580 = vmatmul.bf16.gmra.mxu0 %v486
        %v581 = vpop.f32.mrf.mxu0
        %v582 = vadd.f32 %v422, %v581
        %v583 = vpop.f32.mrf.mxu0
        %v584 = vadd.f32 %v422, %v583
        %585 = vmatmul.bf16.gmra.mxu0 %v487
        %v586 = vpop.f32.mrf.mxu0
        %v587 = vadd.f32 %v422, %v586
        %v588 = vpop.f32.mrf.mxu0
        %v589 = vadd.f32 %v422, %v588
        %590 = vmatmul.bf16.gmra.mxu0 %v488
        %v591 = vpop.f32.mrf.mxu0
        %v592 = vadd.f32 %v422, %v591
        %v593 = vpop.f32.mrf.mxu0
        %v594 = vadd.f32 %v422, %v593
        %595 = vmatmul.bf16.gmra.mxu0 %v489
        %v596 = vpop.f32.mrf.mxu0
        %v597 = vadd.f32 %v422, %v596
        %v598 = vpop.f32.mrf.mxu0
        %v599 = vadd.f32 %v422, %v598
        %600 = vmatmul.bf16.gmra.mxu0 %v490
        %v601 = vpop.f32.mrf.mxu0
        %v602 = vadd.f32 %v422, %v601
        %v603 = vpop.f32.mrf.mxu0
        %v604 = vadd.f32 %v422, %v603
        %605 = vmatmul.bf16.gmra.mxu0 %v491
        %v606 = vpop.f32.mrf.mxu0
        %v607 = vadd.f32 %v422, %v606
        %v608 = vpop.f32.mrf.mxu0
        %v609 = vadd.f32 %v422, %v608
        %610 = vmatmul.bf16.gmra.mxu0 %v492
        %v611 = vpop.f32.mrf.mxu0
        %v612 = vadd.f32 %v422, %v611
        %v613 = vpop.f32.mrf.mxu0
        %v614 = vadd.f32 %v422, %v613
        %615 = vmatmul.bf16.gmra.mxu0 %v493
        %v616 = vpop.f32.mrf.mxu0
        %v617 = vadd.f32 %v422, %v616
        %v618 = vpop.f32.mrf.mxu0
        %v619 = vadd.f32 %v422, %v618
        %620 = vmatmul.bf16.gmra.mxu0 %v494
        %v621 = vpop.f32.mrf.mxu0
        %v622 = vadd.f32 %v422, %v621
        %v623 = vpop.f32.mrf.mxu0
        %v624 = vadd.f32 %v422, %v623
        %625 = vmatmul.bf16.gmra.mxu0 %v495
        %v626 = vpop.f32.mrf.mxu0
        %v627 = vadd.f32 %v422, %v626
        %v628 = vpop.f32.mrf.mxu0
        %v629 = vadd.f32 %v422, %v628
        %630 = vmatmul.bf16.gmra.mxu0 %v496
        %v631 = vpop.f32.mrf.mxu0
        %v632 = vadd.f32 %v422, %v631
        %v633 = vpop.f32.mrf.mxu0
        %v634 = vadd.f32 %v422, %v633
        %635 = vmatmul.bf16.gmra.mxu0 %v497
        %v636 = vpop.f32.mrf.mxu0
        %v637 = vadd.f32 %v422, %v636
        %v638 = vpop.f32.mrf.mxu0
        %v639 = vadd.f32 %v422, %v638
        %640 = vmatmul.bf16.gmra.mxu0 %v498
        %v641 = vpop.f32.mrf.mxu0
        %v642 = vadd.f32 %v422, %v641
        %v643 = vpop.f32.mrf.mxu0
        %v644 = vadd.f32 %v422, %v643
        %645 = vdwg.mxu0
        %v646 = vld [vmem:[%s3] sm:$0x1]
        %vm647 = vcmp.ge.f32.partialorder %v572, 0.0
        %vm648 = vcmp.ge.f32.partialorder %v574, 0.0
        %vm649 = vcmp.ge.f32.partialorder %v577, 0.0
        %vm650 = vcmp.ge.f32.partialorder %v579, 0.0
        %vm651 = vcmp.ge.f32.partialorder %v582, 0.0
        %vm652 = vcmp.ge.f32.partialorder %v584, 0.0
        %vm653 = vcmp.ge.f32.partialorder %v587, 0.0
        %vm654 = vcmp.ge.f32.partialorder %v589, 0.0
        %vm655 = vcmp.ge.f32.partialorder %v592, 0.0
        %vm656 = vcmp.ge.f32.partialorder %v594, 0.0
        %vm657 = vcmp.ge.f32.partialorder %v597, 0.0
        %vm658 = vcmp.ge.f32.partialorder %v599, 0.0
        %vm659 = vcmp.ge.f32.partialorder %v602, 0.0
        %vm660 = vcmp.ge.f32.partialorder %v604, 0.0
        %vm661 = vcmp.ge.f32.partialorder %v607, 0.0
        %vm662 = vcmp.ge.f32.partialorder %v609, 0.0
        %vm663 = vcmp.ge.f32.partialorder %v612, 0.0
        %vm664 = vcmp.ge.f32.partialorder %v614, 0.0
        %vm665 = vcmp.ge.f32.partialorder %v617, 0.0
        %vm666 = vcmp.ge.f32.partialorder %v619, 0.0
        %vm667 = vcmp.ge.f32.partialorder %v622, 0.0
        %vm668 = vcmp.ge.f32.partialorder %v624, 0.0
        %vm669 = vcmp.ge.f32.partialorder %v627, 0.0
        %vm670 = vcmp.ge.f32.partialorder %v629, 0.0
        %vm671 = vcmp.ge.f32.partialorder %v632, 0.0
        %vm672 = vcmp.ge.f32.partialorder %v634, 0.0
        %vm673 = vcmp.ge.f32.partialorder %v637, 0.0
        %vm674 = vcmp.ge.f32.partialorder %v639, 0.0
        %vm675 = vcmp.ge.f32.partialorder %v642, 0.0
        %vm676 = vcmp.ge.f32.partialorder %v644, 0.0
        %v678 = vperm.slane %v646, 0
        %v680 = vmul.f32 %v678, %v572
        %v681 = vmul.f32 %v678, %v574
        %v682 = vmul.f32 %v678, %v577
        %v683 = vmul.f32 %v678, %v579
        %v684 = vmul.f32 %v678, %v582
        %v685 = vmul.f32 %v678, %v584
        %v686 = vmul.f32 %v678, %v587
        %v687 = vmul.f32 %v678, %v589
        %v688 = vmul.f32 %v678, %v592
        %v689 = vmul.f32 %v678, %v594
        %v690 = vmul.f32 %v678, %v597
        %v691 = vmul.f32 %v678, %v599
        %v692 = vmul.f32 %v678, %v602
        %v693 = vmul.f32 %v678, %v604
        %v694 = vmul.f32 %v678, %v607
        %v695 = vmul.f32 %v678, %v609
        %v696 = vmul.f32 %v678, %v612
        %v697 = vmul.f32 %v678, %v614
        %v698 = vmul.f32 %v678, %v617
        %v699 = vmul.f32 %v678, %v619
        %v700 = vmul.f32 %v678, %v622
        %v701 = vmul.f32 %v678, %v624
        %v702 = vmul.f32 %v678, %v627
        %v703 = vmul.f32 %v678, %v629
        %v704 = vmul.f32 %v678, %v632
        %v705 = vmul.f32 %v678, %v634
        %v706 = vmul.f32 %v678, %v637
        %v707 = vmul.f32 %v678, %v639
        %v708 = vmul.f32 %v678, %v642
        %v709 = vmul.f32 %v678, %v644
        %v710 = vsel %vm647, %v572, %v680
        %v711 = vsel %vm648, %v574, %v681
        %v712 = vsel %vm649, %v577, %v682
        %v713 = vsel %vm650, %v579, %v683
        %v714 = vsel %vm651, %v582, %v684
        %v715 = vsel %vm652, %v584, %v685
        %v716 = vsel %vm653, %v587, %v686
        %v717 = vsel %vm654, %v589, %v687
        %v718 = vsel %vm655, %v592, %v688
        %v719 = vsel %vm656, %v594, %v689
        %v720 = vsel %vm657, %v597, %v690
        %v721 = vsel %vm658, %v599, %v691
        %v722 = vsel %vm659, %v602, %v692
        %v723 = vsel %vm660, %v604, %v693
        %v724 = vsel %vm661, %v607, %v694
        %v725 = vsel %vm662, %v609, %v695
        %v726 = vsel %vm663, %v612, %v696
        %v727 = vsel %vm664, %v614, %v697
        %v728 = vsel %vm665, %v617, %v698
        %v729 = vsel %vm666, %v619, %v699
        %v730 = vsel %vm667, %v622, %v700
        %v731 = vsel %vm668, %v624, %v701
        %v732 = vsel %vm669, %v627, %v702
        %v733 = vsel %vm670, %v629, %v703
        %v734 = vsel %vm671, %v632, %v704
        %v735 = vsel %vm672, %v634, %v705
        %v736 = vsel %vm673, %v637, %v706
        %v737 = vsel %vm674, %v639, %v707
        %v738 = vsel %vm675, %v642, %v708
        %v739 = vsel %vm676, %v644, %v709
        %v740 = vlaneseq
        %v741 = vshrl.u32 %v740, 7
        %v742 = vadd.s32 %v741, 8
        %v743 = vstv %s350
        %v744 = vadd.s32 %v741, %v743
        %v745 = vadd.s32 %v742, %v743
        %v746 = vlaneseq
        %v747 = vand.u32 %v746, 127
        %vm748 = vcmp.ge.s32.totalorder %v744, 1
        %vm749 = vcmp.ge.s32.totalorder %v745, 1
        %vm750 = vcmp.le.s32.totalorder %v744, 16
        %vm751 = vcmp.le.s32.totalorder %v745, 16
        %vm752 = vmand %vm748, %vm750
        %vm753 = vmand %vm749, %vm751
        %vm754 = vcmp.ge.s32.totalorder %v747, 1
        %vm755 = vmand %vm752, %vm754
        %vm756 = vmand %vm753, %vm754
        %vm757 = vcmp.le.s32.totalorder %v747, 16
        %vm758 = vmand %vm755, %vm757
        %vm759 = vmand %vm756, %vm757
        %v760 = vsel %vm758, 1, 0
        %v761 = vsel %vm759, 1, 0
        %v762 = vcvt.s32.f32 %v760
        %v763 = vcvt.s32.f32 %v761
        %v764 = vperm.slane %v762, 0
        %v765 = vlaneseq
        %v766 = vshrl.u32 %v765, 7
        %768 = vset.pattern.permute.xlu0 %v766
        %769 = vperm.xlu0 %768, %v764
        %v770 = vpop.permute.xlu0 %769
        %v771 = vlaneseq
        %v772 = vshrl.u32 %v771, 7
        %v773 = vadd.s32 %v772, 8
        %774 = vset.pattern.permute.xlu0 %v773
        %775 = vperm.xlu0 %774, %v764
        %v776 = vpop.permute.xlu0 %775
        %v777 = vlaneseq
        %v778 = vshrl.u32 %v777, 7
        %v779 = vadd.s32 %v778, 16
        %780 = vset.pattern.permute.xlu0 %v779
        %781 = vperm.xlu0 %780, %v764
        %v782 = vpop.permute.xlu0 %781
        %v783 = vperm.slane %v762, 1
        %v784 = vlaneseq
        %v785 = vshrl.u32 %v784, 7
        %787 = vset.pattern.permute.xlu0 %v785
        %788 = vperm.xlu0 %787, %v783
        %v789 = vpop.permute.xlu0 %788
        %v790 = vlaneseq
        %v791 = vshrl.u32 %v790, 7
        %v792 = vadd.s32 %v791, 8
        %793 = vset.pattern.permute.xlu0 %v792
        %794 = vperm.xlu0 %793, %v783
        %v795 = vpop.permute.xlu0 %794
        %v796 = vlaneseq
        %v797 = vshrl.u32 %v796, 7
        %v798 = vadd.s32 %v797, 16
        %799 = vset.pattern.permute.xlu0 %v798
        %800 = vperm.xlu0 %799, %v783
        %v801 = vpop.permute.xlu0 %800
        %v802 = vperm.slane %v762, 2
        %v803 = vlaneseq
        %v804 = vshrl.u32 %v803, 7
        %806 = vset.pattern.permute.xlu0 %v804
        %807 = vperm.xlu0 %806, %v802
        %v808 = vpop.permute.xlu0 %807
        %v809 = vlaneseq
        %v810 = vshrl.u32 %v809, 7
        %v811 = vadd.s32 %v810, 8
        %812 = vset.pattern.permute.xlu0 %v811
        %813 = vperm.xlu0 %812, %v802
        %v814 = vpop.permute.xlu0 %813
        %v815 = vlaneseq
        %v816 = vshrl.u32 %v815, 7
        %v817 = vadd.s32 %v816, 16
        %818 = vset.pattern.permute.xlu0 %v817
        %819 = vperm.xlu0 %818, %v802
        %v820 = vpop.permute.xlu0 %819
        %v821 = vperm.slane %v762, 3
        %v822 = vlaneseq
        %v823 = vshrl.u32 %v822, 7
        %825 = vset.pattern.permute.xlu0 %v823
        %826 = vperm.xlu0 %825, %v821
        %v827 = vpop.permute.xlu0 %826
        %v828 = vlaneseq
        %v829 = vshrl.u32 %v828, 7
        %v830 = vadd.s32 %v829, 8
        %831 = vset.pattern.permute.xlu0 %v830
        %832 = vperm.xlu0 %831, %v821
        %v833 = vpop.permute.xlu0 %832
        %v834 = vlaneseq
        %v835 = vshrl.u32 %v834, 7
        %v836 = vadd.s32 %v835, 16
        %837 = vset.pattern.permute.xlu0 %v836
        %838 = vperm.xlu0 %837, %v821
        %v839 = vpop.permute.xlu0 %838
        %v840 = vperm.slane %v762, 4
        %v841 = vlaneseq
        %v842 = vshrl.u32 %v841, 7
        %844 = vset.pattern.permute.xlu0 %v842
        %845 = vperm.xlu0 %844, %v840
        %v846 = vpop.permute.xlu0 %845
        %v847 = vlaneseq
        %v848 = vshrl.u32 %v847, 7
        %v849 = vadd.s32 %v848, 8
        %850 = vset.pattern.permute.xlu0 %v849
        %851 = vperm.xlu0 %850, %v840
        %v852 = vpop.permute.xlu0 %851
        %v853 = vlaneseq
        %v854 = vshrl.u32 %v853, 7
        %v855 = vadd.s32 %v854, 16
        %856 = vset.pattern.permute.xlu0 %v855
        %857 = vperm.xlu0 %856, %v840
        %v858 = vpop.permute.xlu0 %857
        %v859 = vperm.slane %v762, 5
        %v860 = vlaneseq
        %v861 = vshrl.u32 %v860, 7
        %863 = vset.pattern.permute.xlu0 %v861
        %864 = vperm.xlu0 %863, %v859
        %v865 = vpop.permute.xlu0 %864
        %v866 = vlaneseq
        %v867 = vshrl.u32 %v866, 7
        %v868 = vadd.s32 %v867, 8
        %869 = vset.pattern.permute.xlu0 %v868
        %870 = vperm.xlu0 %869, %v859
        %v871 = vpop.permute.xlu0 %870
        %v872 = vlaneseq
        %v873 = vshrl.u32 %v872, 7
        %v874 = vadd.s32 %v873, 16
        %875 = vset.pattern.permute.xlu0 %v874
        %876 = vperm.xlu0 %875, %v859
        %v877 = vpop.permute.xlu0 %876
        %v878 = vperm.slane %v762, 6
        %v879 = vlaneseq
        %v880 = vshrl.u32 %v879, 7
        %882 = vset.pattern.permute.xlu0 %v880
        %883 = vperm.xlu0 %882, %v878
        %v884 = vpop.permute.xlu0 %883
        %v885 = vlaneseq
        %v886 = vshrl.u32 %v885, 7
        %v887 = vadd.s32 %v886, 8
        %888 = vset.pattern.permute.xlu0 %v887
        %889 = vperm.xlu0 %888, %v878
        %v890 = vpop.permute.xlu0 %889
        %v891 = vlaneseq
        %v892 = vshrl.u32 %v891, 7
        %v893 = vadd.s32 %v892, 16
        %894 = vset.pattern.permute.xlu0 %v893
        %895 = vperm.xlu0 %894, %v878
        %v896 = vpop.permute.xlu0 %895
        %v897 = vperm.slane %v762, 7
        %v898 = vlaneseq
        %v899 = vshrl.u32 %v898, 7
        %901 = vset.pattern.permute.xlu0 %v899
        %902 = vperm.xlu0 %901, %v897
        %v903 = vpop.permute.xlu0 %902
        %v904 = vlaneseq
        %v905 = vshrl.u32 %v904, 7
        %v906 = vadd.s32 %v905, 8
        %907 = vset.pattern.permute.xlu0 %v906
        %908 = vperm.xlu0 %907, %v897
        %v909 = vpop.permute.xlu0 %908
        %v910 = vlaneseq
        %v911 = vshrl.u32 %v910, 7
        %v912 = vadd.s32 %v911, 16
        %913 = vset.pattern.permute.xlu0 %v912
        %914 = vperm.xlu0 %913, %v897
        %v915 = vpop.permute.xlu0 %914
        %v916 = vperm.slane %v763, 0
        %v917 = vlaneseq
        %v918 = vshrl.u32 %v917, 7
        %920 = vset.pattern.permute.xlu0 %v918
        %921 = vperm.xlu0 %920, %v916
        %v922 = vpop.permute.xlu0 %921
        %v923 = vlaneseq
        %v924 = vshrl.u32 %v923, 7
        %v925 = vadd.s32 %v924, 8
        %926 = vset.pattern.permute.xlu0 %v925
        %927 = vperm.xlu0 %926, %v916
        %v928 = vpop.permute.xlu0 %927
        %v929 = vlaneseq
        %v930 = vshrl.u32 %v929, 7
        %v931 = vadd.s32 %v930, 16
        %932 = vset.pattern.permute.xlu0 %v931
        %933 = vperm.xlu0 %932, %v916
        %v934 = vpop.permute.xlu0 %933
        %v935 = vperm.slane %v763, 1
        %v936 = vlaneseq
        %v937 = vshrl.u32 %v936, 7
        %939 = vset.pattern.permute.xlu0 %v937
        %940 = vperm.xlu0 %939, %v935
        %v941 = vpop.permute.xlu0 %940
        %v942 = vlaneseq
        %v943 = vshrl.u32 %v942, 7
        %v944 = vadd.s32 %v943, 8
        %945 = vset.pattern.permute.xlu0 %v944
        %946 = vperm.xlu0 %945, %v935
        %v947 = vpop.permute.xlu0 %946
        %v948 = vlaneseq
        %v949 = vshrl.u32 %v948, 7
        %v950 = vadd.s32 %v949, 16
        %951 = vset.pattern.permute.xlu0 %v950
        %952 = vperm.xlu0 %951, %v935
        %v953 = vpop.permute.xlu0 %952
        %v954 = vmul.f32 %v710, %v770
        %v955 = vmul.f32 %v711, %v776
        %v956 = vmul.f32 %v712, %v782
        %v957 = vmul.f32 %v713, %v789
        %v958 = vmul.f32 %v714, %v795
        %v959 = vmul.f32 %v715, %v801
        %v960 = vmul.f32 %v716, %v808
        %v961 = vmul.f32 %v717, %v814
        %v962 = vmul.f32 %v718, %v820
        %v963 = vmul.f32 %v719, %v827
        %v964 = vmul.f32 %v720, %v833
        %v965 = vmul.f32 %v721, %v839
        %v966 = vmul.f32 %v722, %v846
        %v967 = vmul.f32 %v723, %v852
        %v968 = vmul.f32 %v724, %v858
        %v969 = vmul.f32 %v725, %v865
        %v970 = vmul.f32 %v726, %v871
        %v971 = vmul.f32 %v727, %v877
        %v972 = vmul.f32 %v728, %v884
        %v973 = vmul.f32 %v729, %v890
        %v974 = vmul.f32 %v730, %v896
        %v975 = vmul.f32 %v731, %v903
        %v976 = vmul.f32 %v732, %v909
        %v977 = vmul.f32 %v733, %v915
        %v978 = vmul.f32 %v734, %v922
        %v979 = vmul.f32 %v735, %v928
        %v980 = vmul.f32 %v736, %v934
        %v981 = vmul.f32 %v737, %v941
        %v982 = vmul.f32 %v738, %v947
        %v983 = vmul.f32 %v739, %v953
        %v984 = vld [vmem:[#allocation7] sm:$0x1]
        %v985 = vperm.slane %v984, 0
        %v986 = vmul.f32 %v985, %v954
        %v987 = vmul.f32 %v985, %v955
        %v988 = vmul.f32 %v985, %v957
        %v989 = vmul.f32 %v985, %v958
        %v990 = vmul.f32 %v985, %v960
        %v991 = vmul.f32 %v985, %v961
        %v992 = vmul.f32 %v985, %v963
        %v993 = vmul.f32 %v985, %v964
        %v994 = vmul.f32 %v985, %v966
        %v995 = vmul.f32 %v985, %v967
        %v996 = vmul.f32 %v985, %v969
        %v997 = vmul.f32 %v985, %v970
        %v998 = vmul.f32 %v985, %v972
        %v999 = vmul.f32 %v985, %v973
        %v1000 = vmul.f32 %v985, %v975
        %v1001 = vmul.f32 %v985, %v976
        %v1002 = vadd.f32 %v986, 0.0
        %v1003 = vadd.f32 %v987, 0.0
        %v1004 = vadd.f32 %v988, 0.0
        %v1005 = vadd.f32 %v989, 0.0
        %v1006 = vadd.f32 %v990, 0.0
        %v1007 = vadd.f32 %v991, 0.0
        %v1008 = vadd.f32 %v992, 0.0
        %v1009 = vadd.f32 %v993, 0.0
        %v1010 = vadd.f32 %v994, 0.0
        %v1011 = vadd.f32 %v995, 0.0
        %v1012 = vadd.f32 %v996, 0.0
        %v1013 = vadd.f32 %v997, 0.0
        %v1014 = vadd.f32 %v998, 0.0
        %v1015 = vadd.f32 %v999, 0.0
        %v1016 = vadd.f32 %v1000, 0.0
        %v1017 = vadd.f32 %v1001, 0.0
        %v1018 = vld [vmem:[#allocation7 + $0x3] sm:$0x1]
        %v1019 = vperm.slane %v1018, 0
        %v1020 = vmul.f32 %v1019, %v957
        %v1021 = vmul.f32 %v1019, %v958
        %v1022 = vmul.f32 %v1019, %v960
        %v1023 = vmul.f32 %v1019, %v961
        %v1024 = vmul.f32 %v1019, %v963
        %v1025 = vmul.f32 %v1019, %v964
        %v1026 = vmul.f32 %v1019, %v966
        %v1027 = vmul.f32 %v1019, %v967
        %v1028 = vmul.f32 %v1019, %v969
        %v1029 = vmul.f32 %v1019, %v970
        %v1030 = vmul.f32 %v1019, %v972
        %v1031 = vmul.f32 %v1019, %v973
        %v1032 = vmul.f32 %v1019, %v975
        %v1033 = vmul.f32 %v1019, %v976
        %v1034 = vmul.f32 %v1019, %v978
        %v1035 = vmul.f32 %v1019, %v979
        %v1036 = vadd.f32 %v1002, %v1020
        %v1037 = vadd.f32 %v1003, %v1021
        %v1038 = vadd.f32 %v1004, %v1022
        %v1039 = vadd.f32 %v1005, %v1023
        %v1040 = vadd.f32 %v1006, %v1024
        %v1041 = vadd.f32 %v1007, %v1025
        %v1042 = vadd.f32 %v1008, %v1026
        %v1043 = vadd.f32 %v1009, %v1027
        %v1044 = vadd.f32 %v1010, %v1028
        %v1045 = vadd.f32 %v1011, %v1029
        %v1046 = vadd.f32 %v1012, %v1030
        %v1047 = vadd.f32 %v1013, %v1031
        %v1048 = vadd.f32 %v1014, %v1032
        %v1049 = vadd.f32 %v1015, %v1033
        %v1050 = vadd.f32 %v1016, %v1034
        %v1051 = vadd.f32 %v1017, %v1035
        %v1052 = vld [vmem:[#allocation7 + $0x6] sm:$0x1]
        %v1053 = vperm.slane %v1052, 0
        %v1054 = vmul.f32 %v1053, %v960
        %v1055 = vmul.f32 %v1053, %v961
        %v1056 = vmul.f32 %v1053, %v963
        %v1057 = vmul.f32 %v1053, %v964
        %v1058 = vmul.f32 %v1053, %v966
        %v1059 = vmul.f32 %v1053, %v967
        %v1060 = vmul.f32 %v1053, %v969
        %v1061 = vmul.f32 %v1053, %v970
        %v1062 = vmul.f32 %v1053, %v972
        %v1063 = vmul.f32 %v1053, %v973
        %v1064 = vmul.f32 %v1053, %v975
        %v1065 = vmul.f32 %v1053, %v976
        %v1066 = vmul.f32 %v1053, %v978
        %v1067 = vmul.f32 %v1053, %v979
        %v1068 = vmul.f32 %v1053, %v981
        %v1069 = vmul.f32 %v1053, %v982
        %v1070 = vadd.f32 %v1036, %v1054
        %v1071 = vadd.f32 %v1037, %v1055
        %v1072 = vadd.f32 %v1038, %v1056
        %v1073 = vadd.f32 %v1039, %v1057
        %v1074 = vadd.f32 %v1040, %v1058
        %v1075 = vadd.f32 %v1041, %v1059
        %v1076 = vadd.f32 %v1042, %v1060
        %v1077 = vadd.f32 %v1043, %v1061
        %v1078 = vadd.f32 %v1044, %v1062
        %v1079 = vadd.f32 %v1045, %v1063
        %v1080 = vadd.f32 %v1046, %v1064
        %v1081 = vadd.f32 %v1047, %v1065
        %v1082 = vadd.f32 %v1048, %v1066
        %v1083 = vadd.f32 %v1049, %v1067
        %v1084 = vadd.f32 %v1050, %v1068
        %v1085 = vadd.f32 %v1051, %v1069
        %v1086 = vadd.f32 %v1070, 0.0
        %v1087 = vadd.f32 %v1071, 0.0
        %v1088 = vadd.f32 %v1072, 0.0
        %v1089 = vadd.f32 %v1073, 0.0
        %v1090 = vadd.f32 %v1074, 0.0
        %v1091 = vadd.f32 %v1075, 0.0
        %v1092 = vadd.f32 %v1076, 0.0
        %v1093 = vadd.f32 %v1077, 0.0
        %v1094 = vadd.f32 %v1078, 0.0
        %v1095 = vadd.f32 %v1079, 0.0
        %v1096 = vadd.f32 %v1080, 0.0
        %v1097 = vadd.f32 %v1081, 0.0
        %v1098 = vadd.f32 %v1082, 0.0
        %v1099 = vadd.f32 %v1083, 0.0
        %v1100 = vadd.f32 %v1084, 0.0
        %v1101 = vadd.f32 %v1085, 0.0
        %v1102 = vld [vmem:[#allocation7 + $0x1] sm:$0x1]
        %v1103 = vperm.slane %v1102, 0
        %v1104 = vmul.f32 %v1103, %v954
        %v1105 = vmul.f32 %v1103, %v955
        %v1106 = vmul.f32 %v1103, %v956
        %v1107 = vmul.f32 %v1103, %v957
        %v1108 = vmul.f32 %v1103, %v958
        %v1109 = vmul.f32 %v1103, %v959
        %v1110 = vmul.f32 %v1103, %v960
        %v1111 = vmul.f32 %v1103, %v961
        %v1112 = vmul.f32 %v1103, %v962
        %v1113 = vmul.f32 %v1103, %v963
        %v1114 = vmul.f32 %v1103, %v964
        %v1115 = vmul.f32 %v1103, %v965
        %v1116 = vmul.f32 %v1103, %v966
        %v1117 = vmul.f32 %v1103, %v967
        %v1118 = vmul.f32 %v1103, %v968
        %v1119 = vmul.f32 %v1103, %v969
        %v1120 = vmul.f32 %v1103, %v970
        %v1121 = vmul.f32 %v1103, %v971
        %v1122 = vmul.f32 %v1103, %v972
        %v1123 = vmul.f32 %v1103, %v973
        %v1124 = vmul.f32 %v1103, %v974
        %v1125 = vmul.f32 %v1103, %v975
        %v1126 = vmul.f32 %v1103, %v976
        %v1127 = vmul.f32 %v1103, %v977
        %v1128 = vadd.f32 %v1104, 0.0
        %v1129 = vadd.f32 %v1105, 0.0
        %v1130 = vadd.f32 %v1106, 0.0
        %v1131 = vadd.f32 %v1107, 0.0
        %v1132 = vadd.f32 %v1108, 0.0
        %v1133 = vadd.f32 %v1109, 0.0
        %v1134 = vadd.f32 %v1110, 0.0
        %v1135 = vadd.f32 %v1111, 0.0
        %v1136 = vadd.f32 %v1112, 0.0
        %v1137 = vadd.f32 %v1113, 0.0
        %v1138 = vadd.f32 %v1114, 0.0
        %v1139 = vadd.f32 %v1115, 0.0
        %v1140 = vadd.f32 %v1116, 0.0
        %v1141 = vadd.f32 %v1117, 0.0
        %v1142 = vadd.f32 %v1118, 0.0
        %v1143 = vadd.f32 %v1119, 0.0
        %v1144 = vadd.f32 %v1120, 0.0
        %v1145 = vadd.f32 %v1121, 0.0
        %v1146 = vadd.f32 %v1122, 0.0
        %v1147 = vadd.f32 %v1123, 0.0
        %v1148 = vadd.f32 %v1124, 0.0
        %v1149 = vadd.f32 %v1125, 0.0
        %v1150 = vadd.f32 %v1126, 0.0
        %v1151 = vadd.f32 %v1127, 0.0
        %v1152 = vld [vmem:[#allocation7 + $0x4] sm:$0x1]
        %v1153 = vperm.slane %v1152, 0
        %v1154 = vmul.f32 %v1153, %v957
        %v1155 = vmul.f32 %v1153, %v958
        %v1156 = vmul.f32 %v1153, %v959
        %v1157 = vmul.f32 %v1153, %v960
        %v1158 = vmul.f32 %v1153, %v961
        %v1159 = vmul.f32 %v1153, %v962
        %v1160 = vmul.f32 %v1153, %v963
        %v1161 = vmul.f32 %v1153, %v964
        %v1162 = vmul.f32 %v1153, %v965
        %v1163 = vmul.f32 %v1153, %v966
        %v1164 = vmul.f32 %v1153, %v967
        %v1165 = vmul.f32 %v1153, %v968
        %v1166 = vmul.f32 %v1153, %v969
        %v1167 = vmul.f32 %v1153, %v970
        %v1168 = vmul.f32 %v1153, %v971
        %v1169 = vmul.f32 %v1153, %v972
        %v1170 = vmul.f32 %v1153, %v973
        %v1171 = vmul.f32 %v1153, %v974
        %v1172 = vmul.f32 %v1153, %v975
        %v1173 = vmul.f32 %v1153, %v976
        %v1174 = vmul.f32 %v1153, %v977
        %v1175 = vmul.f32 %v1153, %v978
        %v1176 = vmul.f32 %v1153, %v979
        %v1177 = vmul.f32 %v1153, %v980
        %v1178 = vadd.f32 %v1128, %v1154
        %v1179 = vadd.f32 %v1129, %v1155
        %v1180 = vadd.f32 %v1130, %v1156
        %v1181 = vadd.f32 %v1131, %v1157
        %v1182 = vadd.f32 %v1132, %v1158
        %v1183 = vadd.f32 %v1133, %v1159
        %v1184 = vadd.f32 %v1134, %v1160
        %v1185 = vadd.f32 %v1135, %v1161
        %v1186 = vadd.f32 %v1136, %v1162
        %v1187 = vadd.f32 %v1137, %v1163
        %v1188 = vadd.f32 %v1138, %v1164
        %v1189 = vadd.f32 %v1139, %v1165
        %v1190 = vadd.f32 %v1140, %v1166
        %v1191 = vadd.f32 %v1141, %v1167
        %v1192 = vadd.f32 %v1142, %v1168
        %v1193 = vadd.f32 %v1143, %v1169
        %v1194 = vadd.f32 %v1144, %v1170
        %v1195 = vadd.f32 %v1145, %v1171
        %v1196 = vadd.f32 %v1146, %v1172
        %v1197 = vadd.f32 %v1147, %v1173
        %v1198 = vadd.f32 %v1148, %v1174
        %v1199 = vadd.f32 %v1149, %v1175
        %v1200 = vadd.f32 %v1150, %v1176
        %v1201 = vadd.f32 %v1151, %v1177
        %v1202 = vld [vmem:[#allocation7 + $0x7] sm:$0x1]
        %v1203 = vperm.slane %v1202, 0
        %v1204 = vmul.f32 %v1203, %v960
        %v1205 = vmul.f32 %v1203, %v961
        %v1206 = vmul.f32 %v1203, %v962
        %v1207 = vmul.f32 %v1203, %v963
        %v1208 = vmul.f32 %v1203, %v964
        %v1209 = vmul.f32 %v1203, %v965
        %v1210 = vmul.f32 %v1203, %v966
        %v1211 = vmul.f32 %v1203, %v967
        %v1212 = vmul.f32 %v1203, %v968
        %v1213 = vmul.f32 %v1203, %v969
        %v1214 = vmul.f32 %v1203, %v970
        %v1215 = vmul.f32 %v1203, %v971
        %v1216 = vmul.f32 %v1203, %v972
        %v1217 = vmul.f32 %v1203, %v973
        %v1218 = vmul.f32 %v1203, %v974
        %v1219 = vmul.f32 %v1203, %v975
        %v1220 = vmul.f32 %v1203, %v976
        %v1221 = vmul.f32 %v1203, %v977
        %v1222 = vmul.f32 %v1203, %v978
        %v1223 = vmul.f32 %v1203, %v979
        %v1224 = vmul.f32 %v1203, %v980
        %v1225 = vmul.f32 %v1203, %v981
        %v1226 = vmul.f32 %v1203, %v982
        %v1227 = vmul.f32 %v1203, %v983
        %v1228 = vadd.f32 %v1178, %v1204
        %v1229 = vadd.f32 %v1179, %v1205
        %v1230 = vadd.f32 %v1180, %v1206
        %v1231 = vadd.f32 %v1181, %v1207
        %v1232 = vadd.f32 %v1182, %v1208
        %v1233 = vadd.f32 %v1183, %v1209
        %v1234 = vadd.f32 %v1184, %v1210
        %v1235 = vadd.f32 %v1185, %v1211
        %v1236 = vadd.f32 %v1186, %v1212
        %v1237 = vadd.f32 %v1187, %v1213
        %v1238 = vadd.f32 %v1188, %v1214
        %v1239 = vadd.f32 %v1189, %v1215
        %v1240 = vadd.f32 %v1190, %v1216
        %v1241 = vadd.f32 %v1191, %v1217
        %v1242 = vadd.f32 %v1192, %v1218
        %v1243 = vadd.f32 %v1193, %v1219
        %v1244 = vadd.f32 %v1194, %v1220
        %v1245 = vadd.f32 %v1195, %v1221
        %v1246 = vadd.f32 %v1196, %v1222
        %v1247 = vadd.f32 %v1197, %v1223
        %v1248 = vadd.f32 %v1198, %v1224
        %v1249 = vadd.f32 %v1199, %v1225
        %v1250 = vadd.f32 %v1200, %v1226
        %v1251 = vadd.f32 %v1201, %v1227
        %vm1276 = vcmask 1046528
        %v1277 = vrot.slane %v1228, 1
        %v1278 = vrot.slane %v1229, 1
        %v1279 = vsel %vm1276, %v1277, %v1278
        %v1280 = vrot.slane %v1230, 1
        %v1281 = vsel %vm1276, %v1278, %v1280
        %v1282 = vrot.slane %v1231, 1
        %v1283 = vrot.slane %v1232, 1
        %v1284 = vsel %vm1276, %v1282, %v1283
        %v1285 = vrot.slane %v1233, 1
        %v1286 = vsel %vm1276, %v1283, %v1285
        %v1287 = vrot.slane %v1234, 1
        %v1288 = vrot.slane %v1235, 1
        %v1289 = vsel %vm1276, %v1287, %v1288
        %v1290 = vrot.slane %v1236, 1
        %v1291 = vsel %vm1276, %v1288, %v1290
        %v1292 = vrot.slane %v1237, 1
        %v1293 = vrot.slane %v1238, 1
        %v1294 = vsel %vm1276, %v1292, %v1293
        %v1295 = vrot.slane %v1239, 1
        %v1296 = vsel %vm1276, %v1293, %v1295
        %v1297 = vrot.slane %v1240, 1
        %v1298 = vrot.slane %v1241, 1
        %v1299 = vsel %vm1276, %v1297, %v1298
        %v1300 = vrot.slane %v1242, 1
        %v1301 = vsel %vm1276, %v1298, %v1300
        %v1302 = vrot.slane %v1243, 1
        %v1303 = vrot.slane %v1244, 1
        %v1304 = vsel %vm1276, %v1302, %v1303
        %v1305 = vrot.slane %v1245, 1
        %v1306 = vsel %vm1276, %v1303, %v1305
        %v1307 = vrot.slane %v1246, 1
        %v1308 = vrot.slane %v1247, 1
        %v1309 = vsel %vm1276, %v1307, %v1308
        %v1310 = vrot.slane %v1248, 1
        %v1311 = vsel %vm1276, %v1308, %v1310
        %v1312 = vrot.slane %v1249, 1
        %v1313 = vrot.slane %v1250, 1
        %v1314 = vsel %vm1276, %v1312, %v1313
        %v1315 = vrot.slane %v1251, 1
        %v1316 = vsel %vm1276, %v1313, %v1315
        %v1333 = vadd.f32 %v1086, %v1279
        %v1334 = vadd.f32 %v1087, %v1281
        %v1335 = vadd.f32 %v1088, %v1284
        %v1336 = vadd.f32 %v1089, %v1286
        %v1337 = vadd.f32 %v1090, %v1289
        %v1338 = vadd.f32 %v1091, %v1291
        %v1339 = vadd.f32 %v1092, %v1294
        %v1340 = vadd.f32 %v1093, %v1296
        %v1341 = vadd.f32 %v1094, %v1299
        %v1342 = vadd.f32 %v1095, %v1301
        %v1343 = vadd.f32 %v1096, %v1304
        %v1344 = vadd.f32 %v1097, %v1306
        %v1345 = vadd.f32 %v1098, %v1309
        %v1346 = vadd.f32 %v1099, %v1311
        %v1347 = vadd.f32 %v1100, %v1314
        %v1348 = vadd.f32 %v1101, %v1316
        %v1349 = vld [vmem:[#allocation7 + $0x2] sm:$0x1]
        %v1350 = vperm.slane %v1349, 0
        %v1351 = vmul.f32 %v1350, %v954
        %v1352 = vmul.f32 %v1350, %v955
        %v1353 = vmul.f32 %v1350, %v956
        %v1354 = vmul.f32 %v1350, %v957
        %v1355 = vmul.f32 %v1350, %v958
        %v1356 = vmul.f32 %v1350, %v959
        %v1357 = vmul.f32 %v1350, %v960
        %v1358 = vmul.f32 %v1350, %v961
        %v1359 = vmul.f32 %v1350, %v962
        %v1360 = vmul.f32 %v1350, %v963
        %v1361 = vmul.f32 %v1350, %v964
        %v1362 = vmul.f32 %v1350, %v965
        %v1363 = vmul.f32 %v1350, %v966
        %v1364 = vmul.f32 %v1350, %v967
        %v1365 = vmul.f32 %v1350, %v968
        %v1366 = vmul.f32 %v1350, %v969
        %v1367 = vmul.f32 %v1350, %v970
        %v1368 = vmul.f32 %v1350, %v971
        %v1369 = vmul.f32 %v1350, %v972
        %v1370 = vmul.f32 %v1350, %v973
        %v1371 = vmul.f32 %v1350, %v974
        %v1372 = vmul.f32 %v1350, %v975
        %v1373 = vmul.f32 %v1350, %v976
        %v1374 = vmul.f32 %v1350, %v977
        %v1375 = vadd.f32 %v1351, 0.0
        %v1376 = vadd.f32 %v1352, 0.0
        %v1377 = vadd.f32 %v1353, 0.0
        %v1378 = vadd.f32 %v1354, 0.0
        %v1379 = vadd.f32 %v1355, 0.0
        %v1380 = vadd.f32 %v1356, 0.0
        %v1381 = vadd.f32 %v1357, 0.0
        %v1382 = vadd.f32 %v1358, 0.0
        %v1383 = vadd.f32 %v1359, 0.0
        %v1384 = vadd.f32 %v1360, 0.0
        %v1385 = vadd.f32 %v1361, 0.0
        %v1386 = vadd.f32 %v1362, 0.0
        %v1387 = vadd.f32 %v1363, 0.0
        %v1388 = vadd.f32 %v1364, 0.0
        %v1389 = vadd.f32 %v1365, 0.0
        %v1390 = vadd.f32 %v1366, 0.0
        %v1391 = vadd.f32 %v1367, 0.0
        %v1392 = vadd.f32 %v1368, 0.0
        %v1393 = vadd.f32 %v1369, 0.0
        %v1394 = vadd.f32 %v1370, 0.0
        %v1395 = vadd.f32 %v1371, 0.0
        %v1396 = vadd.f32 %v1372, 0.0
        %v1397 = vadd.f32 %v1373, 0.0
        %v1398 = vadd.f32 %v1374, 0.0
        %v1399 = vld [vmem:[#allocation7 + $0x5] sm:$0x1]
        %v1400 = vperm.slane %v1399, 0
        %v1401 = vmul.f32 %v1400, %v957
        %v1402 = vmul.f32 %v1400, %v958
        %v1403 = vmul.f32 %v1400, %v959
        %v1404 = vmul.f32 %v1400, %v960
        %v1405 = vmul.f32 %v1400, %v961
        %v1406 = vmul.f32 %v1400, %v962
        %v1407 = vmul.f32 %v1400, %v963
        %v1408 = vmul.f32 %v1400, %v964
        %v1409 = vmul.f32 %v1400, %v965
        %v1410 = vmul.f32 %v1400, %v966
        %v1411 = vmul.f32 %v1400, %v967
        %v1412 = vmul.f32 %v1400, %v968
        %v1413 = vmul.f32 %v1400, %v969
        %v1414 = vmul.f32 %v1400, %v970
        %v1415 = vmul.f32 %v1400, %v971
        %v1416 = vmul.f32 %v1400, %v972
        %v1417 = vmul.f32 %v1400, %v973
        %v1418 = vmul.f32 %v1400, %v974
        %v1419 = vmul.f32 %v1400, %v975
        %v1420 = vmul.f32 %v1400, %v976
        %v1421 = vmul.f32 %v1400, %v977
        %v1422 = vmul.f32 %v1400, %v978
        %v1423 = vmul.f32 %v1400, %v979
        %v1424 = vmul.f32 %v1400, %v980
        %v1425 = vadd.f32 %v1375, %v1401
        %v1426 = vadd.f32 %v1376, %v1402
        %v1427 = vadd.f32 %v1377, %v1403
        %v1428 = vadd.f32 %v1378, %v1404
        %v1429 = vadd.f32 %v1379, %v1405
        %v1430 = vadd.f32 %v1380, %v1406
        %v1431 = vadd.f32 %v1381, %v1407
        %v1432 = vadd.f32 %v1382, %v1408
        %v1433 = vadd.f32 %v1383, %v1409
        %v1434 = vadd.f32 %v1384, %v1410
        %v1435 = vadd.f32 %v1385, %v1411
        %v1436 = vadd.f32 %v1386, %v1412
        %v1437 = vadd.f32 %v1387, %v1413
        %v1438 = vadd.f32 %v1388, %v1414
        %v1439 = vadd.f32 %v1389, %v1415
        %v1440 = vadd.f32 %v1390, %v1416
        %v1441 = vadd.f32 %v1391, %v1417
        %v1442 = vadd.f32 %v1392, %v1418
        %v1443 = vadd.f32 %v1393, %v1419
        %v1444 = vadd.f32 %v1394, %v1420
        %v1445 = vadd.f32 %v1395, %v1421
        %v1446 = vadd.f32 %v1396, %v1422
        %v1447 = vadd.f32 %v1397, %v1423
        %v1448 = vadd.f32 %v1398, %v1424
        %v1449 = vld [vmem:[#allocation7 + $0x8] sm:$0x1]
        %v1450 = vperm.slane %v1449, 0
        %v1451 = vmul.f32 %v1450, %v960
        %v1452 = vmul.f32 %v1450, %v961
        %v1453 = vmul.f32 %v1450, %v962
        %v1454 = vmul.f32 %v1450, %v963
        %v1455 = vmul.f32 %v1450, %v964
        %v1456 = vmul.f32 %v1450, %v965
        %v1457 = vmul.f32 %v1450, %v966
        %v1458 = vmul.f32 %v1450, %v967
        %v1459 = vmul.f32 %v1450, %v968
        %v1460 = vmul.f32 %v1450, %v969
        %v1461 = vmul.f32 %v1450, %v970
        %v1462 = vmul.f32 %v1450, %v971
        %v1463 = vmul.f32 %v1450, %v972
        %v1464 = vmul.f32 %v1450, %v973
        %v1465 = vmul.f32 %v1450, %v974
        %v1466 = vmul.f32 %v1450, %v975
        %v1467 = vmul.f32 %v1450, %v976
        %v1468 = vmul.f32 %v1450, %v977
        %v1469 = vmul.f32 %v1450, %v978
        %v1470 = vmul.f32 %v1450, %v979
        %v1471 = vmul.f32 %v1450, %v980
        %v1472 = vmul.f32 %v1450, %v981
        %v1473 = vmul.f32 %v1450, %v982
        %v1474 = vmul.f32 %v1450, %v983
        %v1475 = vadd.f32 %v1425, %v1451
        %v1476 = vadd.f32 %v1426, %v1452
        %v1477 = vadd.f32 %v1427, %v1453
        %v1478 = vadd.f32 %v1428, %v1454
        %v1479 = vadd.f32 %v1429, %v1455
        %v1480 = vadd.f32 %v1430, %v1456
        %v1481 = vadd.f32 %v1431, %v1457
        %v1482 = vadd.f32 %v1432, %v1458
        %v1483 = vadd.f32 %v1433, %v1459
        %v1484 = vadd.f32 %v1434, %v1460
        %v1485 = vadd.f32 %v1435, %v1461
        %v1486 = vadd.f32 %v1436, %v1462
        %v1487 = vadd.f32 %v1437, %v1463
        %v1488 = vadd.f32 %v1438, %v1464
        %v1489 = vadd.f32 %v1439, %v1465
        %v1490 = vadd.f32 %v1440, %v1466
        %v1491 = vadd.f32 %v1441, %v1467
        %v1492 = vadd.f32 %v1442, %v1468
        %v1493 = vadd.f32 %v1443, %v1469
        %v1494 = vadd.f32 %v1444, %v1470
        %v1495 = vadd.f32 %v1445, %v1471
        %v1496 = vadd.f32 %v1446, %v1472
        %v1497 = vadd.f32 %v1447, %v1473
        %v1498 = vadd.f32 %v1448, %v1474
        %vm1523 = vcmask 1045504
        %v1524 = vrot.slane %v1475, 2
        %v1525 = vrot.slane %v1476, 2
        %v1526 = vsel %vm1523, %v1524, %v1525
        %v1527 = vrot.slane %v1477, 2
        %v1528 = vsel %vm1523, %v1525, %v1527
        %v1529 = vrot.slane %v1478, 2
        %v1530 = vrot.slane %v1479, 2
        %v1531 = vsel %vm1523, %v1529, %v1530
        %v1532 = vrot.slane %v1480, 2
        %v1533 = vsel %vm1523, %v1530, %v1532
        %v1534 = vrot.slane %v1481, 2
        %v1535 = vrot.slane %v1482, 2
        %v1536 = vsel %vm1523, %v1534, %v1535
        %v1537 = vrot.slane %v1483, 2
        %v1538 = vsel %vm1523, %v1535, %v1537
        %v1539 = vrot.slane %v1484, 2
        %v1540 = vrot.slane %v1485, 2
        %v1541 = vsel %vm1523, %v1539, %v1540
        %v1542 = vrot.slane %v1486, 2
        %v1543 = vsel %vm1523, %v1540, %v1542
        %v1544 = vrot.slane %v1487, 2
        %v1545 = vrot.slane %v1488, 2
        %v1546 = vsel %vm1523, %v1544, %v1545
        %v1547 = vrot.slane %v1489, 2
        %v1548 = vsel %vm1523, %v1545, %v1547
        %v1549 = vrot.slane %v1490, 2
        %v1550 = vrot.slane %v1491, 2
        %v1551 = vsel %vm1523, %v1549, %v1550
        %v1552 = vrot.slane %v1492, 2
        %v1553 = vsel %vm1523, %v1550, %v1552
        %v1554 = vrot.slane %v1493, 2
        %v1555 = vrot.slane %v1494, 2
        %v1556 = vsel %vm1523, %v1554, %v1555
        %v1557 = vrot.slane %v1495, 2
        %v1558 = vsel %vm1523, %v1555, %v1557
        %v1559 = vrot.slane %v1496, 2
        %v1560 = vrot.slane %v1497, 2
        %v1561 = vsel %vm1523, %v1559, %v1560
        %v1562 = vrot.slane %v1498, 2
        %v1563 = vsel %vm1523, %v1560, %v1562
        %v1580 = vadd.f32 %v1333, %v1526
        %v1581 = vadd.f32 %v1334, %v1528
        %v1582 = vadd.f32 %v1335, %v1531
        %v1583 = vadd.f32 %v1336, %v1533
        %v1584 = vadd.f32 %v1337, %v1536
        %v1585 = vadd.f32 %v1338, %v1538
        %v1586 = vadd.f32 %v1339, %v1541
        %v1587 = vadd.f32 %v1340, %v1543
        %v1588 = vadd.f32 %v1341, %v1546
        %v1589 = vadd.f32 %v1342, %v1548
        %v1590 = vadd.f32 %v1343, %v1551
        %v1591 = vadd.f32 %v1344, %v1553
        %v1592 = vadd.f32 %v1345, %v1556
        %v1593 = vadd.f32 %v1346, %v1558
        %v1594 = vadd.f32 %v1347, %v1561
        %v1595 = vadd.f32 %v1348, %v1563
        %v1596 = vld [vmem:[%s5] sm:$0x1]
        %v1598 = vperm.slane %v1596, 0
        %v1600 = vadd.f32 %v1580, %v1598
        %v1601 = vadd.f32 %v1581, %v1598
        %v1602 = vadd.f32 %v1582, %v1598
        %v1603 = vadd.f32 %v1583, %v1598
        %v1604 = vadd.f32 %v1584, %v1598
        %v1605 = vadd.f32 %v1585, %v1598
        %v1606 = vadd.f32 %v1586, %v1598
        %v1607 = vadd.f32 %v1587, %v1598
        %v1608 = vadd.f32 %v1588, %v1598
        %v1609 = vadd.f32 %v1589, %v1598
        %v1610 = vadd.f32 %v1590, %v1598
        %v1611 = vadd.f32 %v1591, %v1598
        %v1612 = vadd.f32 %v1592, %v1598
        %v1613 = vadd.f32 %v1593, %v1598
        %v1614 = vadd.f32 %v1594, %v1598
        %v1615 = vadd.f32 %v1595, %v1598
        %v1616 = vld [vmem:[%s6] sm:$0x1]
        %vm1617 = vcmp.ge.f32.partialorder %v1600, 0.0
        %vm1618 = vcmp.ge.f32.partialorder %v1601, 0.0
        %vm1619 = vcmp.ge.f32.partialorder %v1602, 0.0
        %vm1620 = vcmp.ge.f32.partialorder %v1603, 0.0
        %vm1621 = vcmp.ge.f32.partialorder %v1604, 0.0
        %vm1622 = vcmp.ge.f32.partialorder %v1605, 0.0
        %vm1623 = vcmp.ge.f32.partialorder %v1606, 0.0
        %vm1624 = vcmp.ge.f32.partialorder %v1607, 0.0
        %vm1625 = vcmp.ge.f32.partialorder %v1608, 0.0
        %vm1626 = vcmp.ge.f32.partialorder %v1609, 0.0
        %vm1627 = vcmp.ge.f32.partialorder %v1610, 0.0
        %vm1628 = vcmp.ge.f32.partialorder %v1611, 0.0
        %vm1629 = vcmp.ge.f32.partialorder %v1612, 0.0
        %vm1630 = vcmp.ge.f32.partialorder %v1613, 0.0
        %vm1631 = vcmp.ge.f32.partialorder %v1614, 0.0
        %vm1632 = vcmp.ge.f32.partialorder %v1615, 0.0
        %v1634 = vperm.slane %v1616, 0
        %v1636 = vmul.f32 %v1634, %v1600
        %v1637 = vmul.f32 %v1634, %v1601
        %v1638 = vmul.f32 %v1634, %v1602
        %v1639 = vmul.f32 %v1634, %v1603
        %v1640 = vmul.f32 %v1634, %v1604
        %v1641 = vmul.f32 %v1634, %v1605
        %v1642 = vmul.f32 %v1634, %v1606
        %v1643 = vmul.f32 %v1634, %v1607
        %v1644 = vmul.f32 %v1634, %v1608
        %v1645 = vmul.f32 %v1634, %v1609
        %v1646 = vmul.f32 %v1634, %v1610
        %v1647 = vmul.f32 %v1634, %v1611
        %v1648 = vmul.f32 %v1634, %v1612
        %v1649 = vmul.f32 %v1634, %v1613
        %v1650 = vmul.f32 %v1634, %v1614
        %v1651 = vmul.f32 %v1634, %v1615
        %v1652 = vsel %vm1617, %v1600, %v1636
        %v1653 = vsel %vm1618, %v1601, %v1637
        %v1654 = vsel %vm1619, %v1602, %v1638
        %v1655 = vsel %vm1620, %v1603, %v1639
        %v1656 = vsel %vm1621, %v1604, %v1640
        %v1657 = vsel %vm1622, %v1605, %v1641
        %v1658 = vsel %vm1623, %v1606, %v1642
        %v1659 = vsel %vm1624, %v1607, %v1643
        %v1660 = vsel %vm1625, %v1608, %v1644
        %v1661 = vsel %vm1626, %v1609, %v1645
        %v1662 = vsel %vm1627, %v1610, %v1646
        %v1663 = vsel %vm1628, %v1611, %v1647
        %v1664 = vsel %vm1629, %v1612, %v1648
        %v1665 = vsel %vm1630, %v1613, %v1649
        %v1666 = vsel %vm1631, %v1614, %v1650
        %v1667 = vsel %vm1632, %v1615, %v1651
        %v1668 = vpack.c.bf16 %v1653, %v1652
        %v1669 = vpack.c.bf16 %v1655, %v1654
        %v1670 = vpack.c.bf16 %v1657, %v1656
        %v1671 = vpack.c.bf16 %v1659, %v1658
        %v1672 = vpack.c.bf16 %v1661, %v1660
        %v1673 = vpack.c.bf16 %v1663, %v1662
        %v1674 = vpack.c.bf16 %v1665, %v1664
        %v1675 = vpack.c.bf16 %v1667, %v1666
        %v1676 = vld [vmem:[#allocation9] sm:$0xf]
        %v1677 = vld [vmem:[#allocation9 + $0x4] sm:$0xf]
        %v1678 = vld [vmem:[#allocation9 + $0x8] sm:$0xf]
        %v1679 = vld [vmem:[#allocation9 + $0xc] sm:$0xf]
        %v1680 = vld [vmem:[#allocation9 + $0x10] sm:$0xf]
        %v1681 = vld [vmem:[#allocation9 + $0x14] sm:$0xf]
        %v1682 = vld [vmem:[#allocation9 + $0x18] sm:$0xf]
        %v1683 = vld [vmem:[#allocation9 + $0x1c] sm:$0xf]
        %v1684 = vld [vmem:[#allocation9 + $0x20] sm:$0xf]
        %v1685 = vld [vmem:[#allocation9 + $0x24] sm:$0xf]
        %v1686 = vld [vmem:[#allocation9 + $0x28] sm:$0xf]
        %v1687 = vld [vmem:[#allocation9 + $0x2c] sm:$0xf]
        %v1688 = vld [vmem:[#allocation9 + $0x30] sm:$0xf]
        %v1689 = vld [vmem:[#allocation9 + $0x34] sm:$0xf]
        %v1690 = vld [vmem:[#allocation9 + $0x38] sm:$0xf]
        %v1691 = vld [vmem:[#allocation9 + $0x3c] sm:$0xf]
        %v1692 = vld [vmem:[%s8] sm:$0x1]
        %v1694 = vperm.slane %v1692, 0
        %v1712 = vunpack.c.l.b16 %v1676
        %v1713 = vunpack.c.l.b16 %v1677
        %v1714 = vunpack.c.l.b16 %v1678
        %v1715 = vunpack.c.l.b16 %v1679
        %v1716 = vunpack.c.l.b16 %v1680
        %v1717 = vunpack.c.l.b16 %v1681
        %v1718 = vunpack.c.l.b16 %v1682
        %v1719 = vunpack.c.l.b16 %v1683
        %v1720 = vunpack.c.l.b16 %v1684
        %v1721 = vunpack.c.l.b16 %v1685
        %v1722 = vunpack.c.l.b16 %v1686
        %v1723 = vunpack.c.l.b16 %v1687
        %v1724 = vunpack.c.l.b16 %v1688
        %v1725 = vunpack.c.l.b16 %v1689
        %v1726 = vunpack.c.l.b16 %v1690
        %v1727 = vunpack.c.l.b16 %v1691
        %v1728 = vpack.c.b16 %v1713, %v1712
        %v1729 = vpack.c.b16 %v1715, %v1714
        %v1730 = vpack.c.b16 %v1717, %v1716
        %v1731 = vpack.c.b16 %v1719, %v1718
        %v1732 = vpack.c.b16 %v1721, %v1720
        %v1733 = vpack.c.b16 %v1723, %v1722
        %v1734 = vpack.c.b16 %v1725, %v1724
        %v1735 = vpack.c.b16 %v1727, %v1726
        %1744 = vmatpush.bf16.msra.mxu0 %v1735
        %1745 = vmatpush.bf16.msra.mxu0 %v1734
        %1746 = vmatpush.bf16.msra.mxu0 %v1733
        %1747 = vmatpush.bf16.msra.mxu0 %v1732
        %1748 = vmatpush.bf16.msra.mxu0 %v1731
        %1749 = vmatpush.bf16.msra.mxu0 %v1730
        %1750 = vmatpush.bf16.msra.mxu0 %v1729
        %1751 = vmatpush.bf16.msra.mxu0 %v1728
        %1752 = vmatmul.bf16.gmra.mxu0 %v1668
        %v1753 = vpop.f32.mrf.mxu0
        %v1754 = vadd.f32 %v1694, %v1753
        %v1755 = vpop.f32.mrf.mxu0
        %v1756 = vadd.f32 %v1694, %v1755
        %1757 = vmatmul.bf16.gmra.mxu0 %v1669
        %v1758 = vpop.f32.mrf.mxu0
        %v1759 = vadd.f32 %v1694, %v1758
        %v1760 = vpop.f32.mrf.mxu0
        %v1761 = vadd.f32 %v1694, %v1760
        %1762 = vmatmul.bf16.gmra.mxu0 %v1670
        %v1763 = vpop.f32.mrf.mxu0
        %v1764 = vadd.f32 %v1694, %v1763
        %v1765 = vpop.f32.mrf.mxu0
        %v1766 = vadd.f32 %v1694, %v1765
        %1767 = vmatmul.bf16.gmra.mxu0 %v1671
        %v1768 = vpop.f32.mrf.mxu0
        %v1769 = vadd.f32 %v1694, %v1768
        %v1770 = vpop.f32.mrf.mxu0
        %v1771 = vadd.f32 %v1694, %v1770
        %1772 = vmatmul.bf16.gmra.mxu0 %v1672
        %v1773 = vpop.f32.mrf.mxu0
        %v1774 = vadd.f32 %v1694, %v1773
        %v1775 = vpop.f32.mrf.mxu0
        %v1776 = vadd.f32 %v1694, %v1775
        %1777 = vmatmul.bf16.gmra.mxu0 %v1673
        %v1778 = vpop.f32.mrf.mxu0
        %v1779 = vadd.f32 %v1694, %v1778
        %v1780 = vpop.f32.mrf.mxu0
        %v1781 = vadd.f32 %v1694, %v1780
        %1782 = vmatmul.bf16.gmra.mxu0 %v1674
        %v1783 = vpop.f32.mrf.mxu0
        %v1784 = vadd.f32 %v1694, %v1783
        %v1785 = vpop.f32.mrf.mxu0
        %v1786 = vadd.f32 %v1694, %v1785
        %1787 = vmatmul.bf16.gmra.mxu0 %v1675
        %v1788 = vpop.f32.mrf.mxu0
        %v1789 = vadd.f32 %v1694, %v1788
        %v1790 = vpop.f32.mrf.mxu0
        %v1791 = vadd.f32 %v1694, %v1790
        %1792 = vdwg.mxu0
        %v1793 = vpack.c.bf16 %v1754, %v1754
        %v1794 = vpack.c.bf16 %v1756, %v1756
        %v1795 = vpack.c.bf16 %v1759, %v1759
        %v1796 = vpack.c.bf16 %v1761, %v1761
        %v1797 = vpack.c.bf16 %v1764, %v1764
        %v1798 = vpack.c.bf16 %v1766, %v1766
        %v1799 = vpack.c.bf16 %v1769, %v1769
        %v1800 = vpack.c.bf16 %v1771, %v1771
        %v1801 = vpack.c.bf16 %v1774, %v1774
        %v1802 = vpack.c.bf16 %v1776, %v1776
        %v1803 = vpack.c.bf16 %v1779, %v1779
        %v1804 = vpack.c.bf16 %v1781, %v1781
        %v1805 = vpack.c.bf16 %v1784, %v1784
        %v1806 = vpack.c.bf16 %v1786, %v1786
        %v1807 = vpack.c.bf16 %v1789, %v1789
        %v1808 = vpack.c.bf16 %v1791, %v1791
        %1809 = vst [vmem:[%s348] sm:$0xf] %v1793
        %1810 = vst [vmem:[%s348 + $0x4] sm:$0xf] %v1794
        %1811 = vst [vmem:[%s348 + $0x8] sm:$0xf] %v1795
        %1812 = vst [vmem:[%s348 + $0xc] sm:$0xf] %v1796
        %1813 = vst [vmem:[%s348 + $0x10] sm:$0xf] %v1797
        %1814 = vst [vmem:[%s348 + $0x14] sm:$0xf] %v1798
        %1815 = vst [vmem:[%s348 + $0x18] sm:$0xf] %v1799
        %1816 = vst [vmem:[%s348 + $0x1c] sm:$0xf] %v1800
        %1817 = vst [vmem:[%s348 + $0x20] sm:$0xf] %v1801
        %1818 = vst [vmem:[%s348 + $0x24] sm:$0xf] %v1802
        %1819 = vst [vmem:[%s348 + $0x28] sm:$0xf] %v1803
        %1820 = vst [vmem:[%s348 + $0x2c] sm:$0xf] %v1804
        %1821 = vst [vmem:[%s348 + $0x30] sm:$0xf] %v1805
        %1822 = vst [vmem:[%s348 + $0x34] sm:$0xf] %v1806
        %1823 = vst [vmem:[%s348 + $0x38] sm:$0xf] %v1807
        %1824 = vst [vmem:[%s348 + $0x3c] sm:$0xf] %v1808
        %s1825 = sand.u32 %s215, 1
        %s1826 = scalar_lea.sflag [#allocation6], %s1825
        %s1827 = sand.u32 %s215, 1
        %s1828 = smul.addr %s1827, 64
        %s1829 = scalar_lea.vmem [#allocation10], %s1828
        // Predicated region
        $region69: #{tpu_custom_call.1} parent=51 // pred_check
          %p1830 = pneg %p225
        $region70: #{tpu_custom_call.1} parent=51 // pred_check_branch
          %1832 = sbr.rel (%p1830) target = $region72
        $region71: #{tpu_custom_call.1} parent=51 // pred_region
          %s1833 = smul.u32 8, %s30
          %1835 = vsyncadd %s1826, 0
          %s1836 = smul.addr %s1833, 2
          %s1837 = smul.addr %s29, 32
          %s1838 = sadd.s32 %s1836, %s1837
          %s1839 = smul.addr %s1838, 4
          %s1840 = scalar_lea.hbm %s9, %s1839
          %s1841 = sshll.u32 %s1829, 4
          %s1842 = int_to_ptr.vmem [resolvable:$true] %s1841
          %s1843 = sshll.u32 %s1840, 4
          %s1844 = int_to_ptr.hbm [resolvable:$true] %s1843
          %1849 = dma.vmem_to_hbm [thread:$0]  %s1842, 1024, %s1844, %s1826, 64, 64, 4
        $region72: #{tpu_custom_call.1} parent=51 // pred_fallthru
          _
      $region52: #{tpu_custom_call.1} parent=5 // pred_fallthru
        _
      %p1850 = scmp.le.s32.totalorder 2, %s20
      // Predicated region
      $region73: #{tpu_custom_call.1} parent=5 // pred_check
        %p1851 = pneg %p1850
      $region74: #{tpu_custom_call.1} parent=5 // pred_check_branch
        %1853 = sbr.rel (%p1851) target = $region76
      $region75: #{tpu_custom_call.1} parent=5 // pred_region
        %s1854 = ssub.s32 %s20, 2
        // Predicated region
        $region77: #{tpu_custom_call.1} parent=75 // pred_check
          %p1855 = pneg %p231
        $region78: #{tpu_custom_call.1} parent=75 // pred_check_branch
          %1857 = sbr.rel (%p1855) target = $region80
        $region79: #{tpu_custom_call.1} parent=75 // pred_region
          %s1858 = sand.u32 %s216, 1
          %s1859 = scalar_lea.sflag [#allocation6], %s1858
          %s1860 = sand.u32 %s216, 1
          %s1861 = smul.addr %s1860, 64
          %s1862 = scalar_lea.vmem [#allocation10], %s1861
          %1864 = dma.done %s1859, 1024
        $region80: #{tpu_custom_call.1} parent=75 // pred_fallthru
          _
      $region76: #{tpu_custom_call.1} parent=5 // pred_fallthru
        _
    $region6: #{tpu_custom_call.1} parent=1 // loop_footer
      %s24 = sadd.s32 1, %s20
    $region7: #{tpu_custom_call.1} parent=1 // loop_footer_branch
      %19 = sbr.rel target = $region3
    $region8: #{tpu_custom_call.1} parent=1 // loop_exit
      _
    %1865 = vsyncpa [#allocation5], 1
    %s1866 = scalar_lea.sflag [#allocation5], 1
    %1867 = vsyncpa %s1866, 1
    %1868 = vsyncpa [#allocation8], 1
    %1869 = vsyncpa [#allocation6], 1
    %s1870 = scalar_lea.sflag [#allocation6], 1
    %1871 = vsyncpa %s1870, 1
  %1872 = vsyncmov [#allocation3]
  %s1873 = vpop.sfrf %1872
  %p1874 = scmp.eq.s32.totalorder %s1873, 0
  %p1875 = pneg %p1874
  %1877 = shalt.err (%p1875)

</llo_original>
